<compile_context>
chip_gen: v6e
topology: v6e:2x2x1
jax: 0.10.0
libtpu: 0.0.40
codegen_flags: <defaults>
</compile_context>

<pallas_src>
import jax
import jax.numpy as jnp
from jax.experimental import pallas as pl
from jax.experimental.pallas import tpu as pltpu


def _round_up(n, m):
    return ((n + m - 1) // m) * m


def _causal_scorer_kernel(px_ref, py_ref, w2_ref, b2_ref, w3_ref, b3_ref, out_ref):
    TM, Hp = px_ref.shape        # px tile: rows i of (x @ W1[:H] + b1), padded to Hp lanes
    TN = py_ref.shape[0]         # py tile: rows j of (y @ W1[H:]),      padded to Hp lanes
    Kp = w2_ref.shape[1]

    # Chunk the TM x-rows so each step feeds the MXU a (CR*TN, Hp) matmul (>=1024 rows
    # at TN=128) while keeping the hidden intermediates O(CR*TN*Hp) in VMEM.
    CR = 8 if TM % 8 == 0 else TM
    n_chunks = TM // CR

    py = py_ref[...]             # (TN, Hp)  elementwise dtype (bf16 by default)
    py_b = py[None, :, :]        # hoisted: JAX does not CSE broadcast/reshape in loops
    w2 = w2_ref[...]             # (Hp, Kp)  bf16 MXU weights (VMEM-resident)
    b2 = b2_ref[...]             # (1, Kp)   f32
    w3_b = w3_ref[...][None]     # (1, 1, Kp) f32, 1/temp pre-folded
    b3 = b3_ref[...]             # (1, 1)    f32, 1/temp pre-folded

    @pl.loop(0, n_chunks)
    def _(c):
        r0 = pl.multiple_of(c * CR, CR)
        px_c = px_ref[pl.ds(r0, CR), :]                                     # (CR, Hp)

        # Broadcast-add + ReLU for this chunk of pairs (Dropout is identity at inference).
        # TODO(synk): nn.Dropout has no inference-time effect; omitted (identity).
        h1 = jnp.maximum(px_c[:, None, :] + py_b, 0)                        # (CR, TN, Hp)
        h1 = h1.astype(jnp.bfloat16).reshape(CR * TN, Hp)                   # merge sublane dims only

        # Second Linear on the flattened chunk (bf16 MXU inputs, f32 accumulation) + ReLU.
        h2 = jnp.dot(h1, w2, preferred_element_type=jnp.float32) + b2       # (CR*TN, Kp)
        h2 = jnp.maximum(h2, 0.0).reshape(CR, TN, Kp)                       # split sublane dims only

        # Final width-1 Linear as VPU multiply + lane (XLU) reduce; result is (CR, TN)
        # with TN on lanes -> unmasked, lane-dense stores.
        s = jnp.sum(h2 * w3_b, axis=-1) + b3                                # (CR, TN)
        out_ref[pl.ds(r0, CR), :] = s.astype(out_ref.dtype)


def causal_scorer(x, y, params, *, temp=0.05, tm=128, tn=128,
                  elementwise_dtype=jnp.bfloat16):
    """x, y: (B, H) float32. params: w1 (2H,H), b1, w2 (H,H//2), b2, w3 (H//2,1), b3.
    Returns the (B, B) score matrix. On v5e pass elementwise_dtype=jnp.float32."""
    B, H = x.shape
    K = H // 2
    assert tn % 128 == 0, "tn must keep the output tile 128-lane dense"

    Hp = _round_up(H, 128)
    Kp = _round_up(K, 128)

    # ---- First Linear hoisted out of the grid: one f32 XLA matmul per side ----
    w1 = params["w1"].astype(jnp.float32)
    px = x.astype(jnp.float32) @ w1[:H] + params["b1"].reshape(1, H)        # (B, H)
    py = y.astype(jnp.float32) @ w1[H:]                                     # (B, H)

    # ---- Remaining params: bf16 MXU weights, lane-dense K/H padding, fold 1/temp ----
    w2p = jnp.zeros((Hp, Kp), jnp.bfloat16).at[:H, :K].set(
        params["w2"].astype(jnp.bfloat16))
    b2p = jnp.zeros((1, Kp), jnp.float32).at[:, :K].set(
        params["b2"].reshape(1, K).astype(jnp.float32))
    w3p = jnp.zeros((1, Kp), jnp.float32).at[:, :K].set(
        (params["w3"].reshape(1, K) / temp).astype(jnp.float32))
    b3p = (params["b3"].reshape(1, 1) / temp).astype(jnp.float32)

    # ---- Tile sizes & batch padding (rows -> mult of 16 for bf16 packing, cols -> 128) ----
    tm = min(_round_up(tm, 16), _round_up(B, 16))
    # v7x megacore: ensure >=2 i-tiles when possible so both TensorCores get work.
    if _round_up(B, 16) // tm < 2 and tm % 32 == 0:
        tm //= 2
    bi = _round_up(B, tm)
    bj = _round_up(B, tn)

    pxp = jnp.zeros((bi, Hp), elementwise_dtype).at[:B, :H].set(
        px.astype(elementwise_dtype))
    pyp = jnp.zeros((bj, Hp), elementwise_dtype).at[:B, :H].set(
        py.astype(elementwise_dtype))

    grid = (bi // tm, bj // tn)
    const = lambda i, j: (0, 0)

    esz = jnp.dtype(elementwise_dtype).itemsize
    cost = pl.CostEstimate(
        flops=int(2 * bi * bj * Hp * Kp + 4 * bi * bj * Hp),
        transcendentals=0,
        bytes_accessed=int(bi * Hp * esz + grid[0] * bj * Hp * esz
                           + Hp * Kp * 2 + bi * bj * 4),
    )

    out = pl.pallas_call(
        _causal_scorer_kernel,
        out_shape=jax.ShapeDtypeStruct((bi, bj), jnp.float32),
        grid=grid,
        in_specs=[
            pl.BlockSpec((tm, Hp), lambda i, j: (i, 0)),           # px tile (rows i)
            pl.BlockSpec((tn, Hp), lambda i, j: (j, 0)),           # py tile (cols j)
            pl.BlockSpec((Hp, Kp), const),                         # W2 (VMEM-resident)
            pl.BlockSpec((1, Kp), const),                          # b2
            pl.BlockSpec((1, Kp), const),                          # w3 / temp
            pl.BlockSpec((1, 1), const),                           # b3 / temp
        ],
        out_specs=pl.BlockSpec((tm, tn), lambda i, j: (i, j)),
        compiler_params=pltpu.CompilerParams(
            dimension_semantics=("parallel", "parallel"),
            vmem_limit_bytes=40 * 1024 * 1024,                     # headroom on 64 MiB v7x
        ),
        cost_estimate=cost,
    )(pxp, pyp, w2p, b2p, w3p, b3p)

    return out[:B, :B]


def _xavier_uniform(key, fan_in, fan_out):
    bound = (6.0 / (fan_in + fan_out)) ** 0.5
    # stored as (in, out) — xavier bound is symmetric in fan_in/fan_out
    return jax.random.uniform(key, (fan_in, fan_out), jnp.float32, -bound, bound)


def init_params(key, hidden_size):
    H = hidden_size
    k1, k2, k3 = jax.random.split(key, 3)
    return {
        "w1": _xavier_uniform(k1, 2 * H, H),
        "b1": jnp.full((1, H), 0.01, jnp.float32),
        "w2": _xavier_uniform(k2, H, H // 2),
        "b2": jnp.full((1, H // 2), 0.01, jnp.float32),
        "w3": _xavier_uniform(k3, H // 2, 1),
        "b3": jnp.full((1, 1), 0.01, jnp.float32),
    }


def causal_scorer_ref(x, y, params, *, temp=0.05):
    """Pure-JAX reference following the PyTorch code literally (f32 throughout)."""
    B, H = x.shape
    idx0, idx1 = jnp.meshgrid(jnp.arange(B), jnp.arange(B), indexing="ij")
    pair = jnp.concatenate([x[idx0.reshape(-1)], y[idx1.reshape(-1)]], axis=1)
    h1 = jnp.maximum(pair @ params["w1"] + params["b1"], 0.0)
    h2 = jnp.maximum(h1 @ params["w2"] + params["b2"], 0.0)
    s = h2 @ params["w3"] + params["b3"]
    return s.reshape(B, B) / temp


if __name__ == "__main__":
    B, H = 8, 32
    key = jax.random.PRNGKey(0)
    kx, ky, kp = jax.random.split(key, 3)
    x = jax.random.normal(kx, (B, H), jnp.float32)
    y = jax.random.normal(ky, (B, H), jnp.float32)
    params = init_params(kp, H)

    out = causal_scorer(x, y, params, temp=0.05)
    out = jax.block_until_ready(out)

    ref = causal_scorer_ref(x, y, params, temp=0.05)
    assert out.shape == (B, B)
    # bf16 elementwise + bf16 MXU inputs (f32 accumulation) -> scale-relative tolerance.
    scale = max(float(jnp.max(jnp.abs(ref))), 1.0)
    max_err = float(jnp.max(jnp.abs(out - ref)))
    assert max_err <= 5e-2 * scale, f"mismatch vs reference: {max_err} (scale {scale})"
    print("KERNEL_OK")
</pallas_src>

<mosaic_0001>
module attributes {stable_mosaic.version = 11 : i64} {
  func.func @_causal_scorer_kernel(%arg0: i32, %arg1: i32, %arg2: memref<16x128xbf16, #tpu.memory_space<vmem>>, %arg3: memref<128x128xbf16, #tpu.memory_space<vmem>>, %arg4: memref<128x128xbf16, #tpu.memory_space<vmem>>, %arg5: memref<1x128xf32, #tpu.memory_space<vmem>>, %arg6: memref<1x128xf32, #tpu.memory_space<vmem>>, %arg7: memref<1x1xf32, #tpu.memory_space<vmem>>, %arg8: memref<16x128xf32, #tpu.memory_space<vmem>>) attributes {dimension_semantics = [#tpu.dimension_semantics<parallel>, #tpu.dimension_semantics<parallel>], iteration_bounds = array<i64: 1, 1>, scalar_prefetch = 0 : i64, scratch_operands = 0 : i64, tpu.core_type = #tpu.core_type<tc>, window_params = [{transform_indices = @transform_0, window_bounds = array<i64: 16, 128>}, {transform_indices = @transform_1, window_bounds = array<i64: 128, 128>}, {pipeline_mode = #tpu.pipeline_mode<synchronous>, transform_indices = @transform_2, window_bounds = array<i64: 128, 128>}, {pipeline_mode = #tpu.pipeline_mode<synchronous>, transform_indices = @transform_3, window_bounds = array<i64: 1, 128>}, {pipeline_mode = #tpu.pipeline_mode<synchronous>, transform_indices = @transform_4, window_bounds = array<i64: 1, 128>}, {pipeline_mode = #tpu.pipeline_mode<synchronous>, transform_indices = @transform_5, window_bounds = array<i64: 1, 1>}, {transform_indices = @transform_6, window_bounds = array<i64: 16, 128>}]} {
    %c0 = arith.constant 0 : index
    %c0_0 = arith.constant 0 : index
    %0 = vector.load %arg3[%c0, %c0_0] : memref<128x128xbf16, #tpu.memory_space<vmem>>, vector<128x128xbf16>
    %1 = vector.shape_cast %0 : vector<128x128xbf16> to vector<1x128x128xbf16>
    %c0_1 = arith.constant 0 : index
    %c0_2 = arith.constant 0 : index
    %2 = vector.load %arg4[%c0_1, %c0_2] : memref<128x128xbf16, #tpu.memory_space<vmem>>, vector<128x128xbf16>
    %c0_3 = arith.constant 0 : index
    %c0_4 = arith.constant 0 : index
    %3 = vector.load %arg5[%c0_3, %c0_4] : memref<1x128xf32, #tpu.memory_space<vmem>>, vector<1x128xf32>
    %c0_5 = arith.constant 0 : index
    %c0_6 = arith.constant 0 : index
    %4 = vector.load %arg6[%c0_5, %c0_6] : memref<1x128xf32, #tpu.memory_space<vmem>>, vector<1x128xf32>
    %5 = vector.shape_cast %4 : vector<1x128xf32> to vector<1x1x128xf32>
    %c0_7 = arith.constant 0 : index
    %c0_8 = arith.constant 0 : index
    %6 = vector.load %arg7[%c0_7, %c0_8] : memref<1x1xf32, #tpu.memory_space<vmem>>, vector<1x1xf32>
    %c0_i32 = arith.constant 0 : i32
    %c2_i32 = arith.constant 2 : i32
    %7 = arith.addi %c0_i32, %c2_i32 : i32
    %c1_i32 = arith.constant 1 : i32
    scf.for %arg9 = %c0_i32 to %7 step %c1_i32  : i32 {
      %c1_i32_10 = arith.constant 1 : i32
      %8 = arith.muli %arg9, %c1_i32_10 : i32
      %c0_i32_11 = arith.constant 0 : i32
      %9 = arith.addi %c0_i32_11, %8 : i32
      %c8_i32 = arith.constant 8 : i32
      %10 = arith.muli %9, %c8_i32 : i32
      %11 = tpu.assume_multiple %10, 8 : i32
      %12 = arith.index_cast %11 : i32 to index
      %c0_12 = arith.constant 0 : index
      %13 = vector.load %arg2[%12, %c0_12] : memref<16x128xbf16, #tpu.memory_space<vmem>>, vector<8x128xbf16>
      %14 = vector.shape_cast %13 : vector<8x128xbf16> to vector<8x1x128xbf16>
      %15 = vector.broadcast %14 : vector<8x1x128xbf16> to vector<8x128x128xbf16>
      %16 = vector.broadcast %1 : vector<1x128x128xbf16> to vector<8x128x128xbf16>
      %17 = arith.addf %15, %16 : vector<8x128x128xbf16>
      %cst = arith.constant 0.000000e+00 : bf16
      %18 = vector.broadcast %cst : bf16 to vector<8x128x128xbf16>
      %19 = arith.maximumf %17, %18 : vector<8x128x128xbf16>
      %20 = vector.shape_cast %19 : vector<8x128x128xbf16> to vector<1024x128xbf16>
      %cst_13 = arith.constant dense<0.000000e+00> : vector<1024x128xf32>
      %21 = tpu.matmul %20, %2, %cst_13 {dimension_numbers = #tpu.dot_dimension_numbers<[1], [0], [0], [1], [0, 0, 1, 1], [], []>} : vector<1024x128xbf16>, vector<128x128xbf16>, vector<1024x128xf32> -> vector<1024x128xf32>
      %22 = vector.broadcast %3 : vector<1x128xf32> to vector<1024x128xf32>
      %23 = arith.addf %21, %22 : vector<1024x128xf32>
      %cst_14 = arith.constant 0.000000e+00 : f32
      %24 = vector.broadcast %cst_14 : f32 to vector<1024x128xf32>
      %25 = arith.maximumf %23, %24 : vector<1024x128xf32>
      %26 = vector.shape_cast %25 : vector<1024x128xf32> to vector<8x128x128xf32>
      %27 = vector.broadcast %5 : vector<1x1x128xf32> to vector<8x128x128xf32>
      %28 = arith.mulf %26, %27 : vector<8x128x128xf32>
      %cst_15 = arith.constant dense<0.000000e+00> : vector<8x128xf32>
      %29 = vector.multi_reduction <add>, %28, %cst_15 [2] : vector<8x128x128xf32> to vector<8x128xf32>
      %30 = vector.broadcast %6 : vector<1x1xf32> to vector<8x128xf32>
      %31 = arith.addf %29, %30 : vector<8x128xf32>
      %32 = arith.index_cast %11 : i32 to index
      %c0_16 = arith.constant 0 : index
      %33 = vector.load %arg8[%32, %c0_16] : memref<16x128xf32, #tpu.memory_space<vmem>>, vector<8x128xf32>
      tpu.vector_store %arg8[%32, %c0_16], %31 {strides = array<i32>} : memref<16x128xf32, #tpu.memory_space<vmem>>, vector<8x128xf32>,
    }
    %c2_i32_9 = arith.constant 2 : i32
    return
  }
  func.func @transform_0(%arg0: i32, %arg1: i32) -> (i32, i32) {
    %c0_i32 = arith.constant 0 : i32
    %c0_i32_0 = arith.constant 0 : i32
    return %arg0, %c0_i32 : i32, i32
  }
  func.func @transform_1(%arg0: i32, %arg1: i32) -> (i32, i32) {
    %c0_i32 = arith.constant 0 : i32
    %c0_i32_0 = arith.constant 0 : i32
    return %arg1, %c0_i32 : i32, i32
  }
  func.func @transform_2(%arg0: i32, %arg1: i32) -> (i32, i32) {
    %c0_i32 = arith.constant 0 : i32
    %c0_i32_0 = arith.constant 0 : i32
    %c0_i32_1 = arith.constant 0 : i32
    return %c0_i32, %c0_i32_0 : i32, i32
  }
  func.func @transform_3(%arg0: i32, %arg1: i32) -> (i32, i32) {
    %c0_i32 = arith.constant 0 : i32
    %c0_i32_0 = arith.constant 0 : i32
    %c0_i32_1 = arith.constant 0 : i32
    return %c0_i32, %c0_i32_0 : i32, i32
  }
  func.func @transform_4(%arg0: i32, %arg1: i32) -> (i32, i32) {
    %c0_i32 = arith.constant 0 : i32
    %c0_i32_0 = arith.constant 0 : i32
    %c0_i32_1 = arith.constant 0 : i32
    return %c0_i32, %c0_i32_0 : i32, i32
  }
  func.func @transform_5(%arg0: i32, %arg1: i32) -> (i32, i32) {
    %c0_i32 = arith.constant 0 : i32
    %c0_i32_0 = arith.constant 0 : i32
    %c0_i32_1 = arith.constant 0 : i32
    return %c0_i32, %c0_i32_0 : i32, i32
  }
  func.func @transform_6(%arg0: i32, %arg1: i32) -> (i32, i32) {
    %c0_i32 = arith.constant 0 : i32
    return %arg0, %arg1 : i32, i32
  }
}

</mosaic_0001>

<llo_original>
// kernel: tpu_custom_call.1
$region0: #{tpu_custom_call.1}
  #allocation0 [shape = 'u32[]', space=smem, size = 0x4, offset = 0x4, fixed_abs, tag = 'smem constant byte address 0x4 - core index']
  #allocation1 [shape = 'u32[144,128]{1,0:T(1,128)}', space=vmem, size = 0x12000, scoped, tag = 'internal scratch']
  #allocation2 [shape = 'f32[1,1]{1,0:T(1,128)S(1)}', space=vmem, size = 0x200, scoped, tag = 'scoped memory for tpu_custom_call.1']
  %s0 = inlined_call_operand.hbm [shape: bf16[16,128], index: 0, kind: input, shape index: {}]
  %s1 = inlined_call_operand.hbm [shape: bf16[128,128], index: 1, kind: input, shape index: {}]
  %s2 = inlined_call_operand.hbm [shape: bf16[128,128], index: 2, kind: input, shape index: {}]
  %s3 = inlined_call_operand.vmem [shape: f32[1,128], index: 3, kind: input, shape index: {}]
  %s4 = inlined_call_operand.vmem [shape: f32[1,128], index: 4, kind: input, shape index: {}]
  %s5 = inlined_call_operand.<no memory space> [shape: f32[1,1], index: 5, kind: input, shape index: {}]
  %s6 = inlined_call_operand.hbm [shape: f32[16,128], index: 6, kind: output, shape index: {}]
  %s7 = sld [smem:[#allocation0]]
  $region53: #{tpu_custom_call.1} parent=0
    _
  %s9 = ssub.s32 1, %s7
  %s10 = scalar_select 0, %s9, %s7
  %v11 = vstv %s5
  %12 = vst [vmem:[#allocation2] sm:$0x1] %v11
  $region1: #{tpu_custom_call.1} parent=0
    #allocation3 [shape = 'u8[4096]{0}', space=vmem, size = 0x1000, scoped, tag = 'input window, operand 0, single buffered']
    #allocation4 [shape = 's32[1]{0}', space=sflag, size = 0x4, scoped, tag = 'scoped memory for tpu_custom_call.1']
    #allocation5 [shape = 's32[1]{0}', space=sflag, size = 0x4, scoped, tag = 'scoped memory for tpu_custom_call.1']
    #allocation6 [shape = 'u8[32768]{0}', space=vmem, size = 0x8000, scoped, tag = 'input window, operand 1, single buffered']
    #allocation7 [shape = 's32[1]{0}', space=sflag, size = 0x4, scoped, tag = 'scoped memory for tpu_custom_call.1']
    #allocation8 [shape = 'u8[32768]{0}', space=vmem, size = 0x8000, scoped, tag = 'input window, operand 2, single buffered']
    #allocation9 [shape = 'u8[8192]{0}', space=vmem, size = 0x2000, scoped, tag = 'output window, operand 0, single buffered']
    %13 = vsyncpa [#allocation4], 0
    %14 = vsyncpa [#allocation7], 0
    %15 = vsyncpa [#allocation5], 0
    // Predicated region
    $region2: #{tpu_custom_call.1} parent=1 // pred_check
      _
    $region3: #{tpu_custom_call.1} parent=1 // pred_check_branch
      %17 = sbr.rel (0) target = $region5
    $region4: #{tpu_custom_call.1} parent=1 // pred_region
      %s19 = ssub.s32 128, 128
      %20 = vsyncadd [#allocation4], %s19
      %s21 = sshll.u32 [#allocation3], 4
      %s22 = int_to_ptr.vmem [resolvable:$true] %s21
      %27 = dma.hbm_to_vmem [thread:$0]  %s0, 128, %s22, [#allocation4], 64, 64, 4
    $region5: #{tpu_custom_call.1} parent=1 // pred_fallthru
      _
    // Predicated region
    $region6: #{tpu_custom_call.1} parent=1 // pred_check
      _
    $region7: #{tpu_custom_call.1} parent=1 // pred_check_branch
      %29 = sbr.rel (0) target = $region9
    $region8: #{tpu_custom_call.1} parent=1 // pred_region
      %s31 = ssub.s32 1024, 1024
      %32 = vsyncadd [#allocation7], %s31
      %s33 = sshll.u32 [#allocation6], 4
      %s34 = int_to_ptr.vmem [resolvable:$true] %s33
      %39 = dma.hbm_to_vmem [thread:$0]  %s1, 1024, %s34, [#allocation7], 64, 64, 4
    $region9: #{tpu_custom_call.1} parent=1 // pred_fallthru
      _
    // Predicated region
    $region10: #{tpu_custom_call.1} parent=1 // pred_check
      _
    $region11: #{tpu_custom_call.1} parent=1 // pred_check_branch
      %41 = sbr.rel (0) target = $region13
    $region12: #{tpu_custom_call.1} parent=1 // pred_region
      %s43 = ssub.s32 1024, 1024
      %44 = vsyncadd [#allocation7], %s43
      %s45 = sshll.u32 [#allocation8], 4
      %s46 = int_to_ptr.vmem [resolvable:$true] %s45
      %51 = dma.hbm_to_vmem [thread:$0]  %s2, 1024, %s46, [#allocation7], 64, 64, 4
    $region13: #{tpu_custom_call.1} parent=1 // pred_fallthru
      _
    // Predicated region
    $region14: #{tpu_custom_call.1} parent=1 // pred_check
      _
    $region15: #{tpu_custom_call.1} parent=1 // pred_check_branch
      %53 = sbr.rel (0) target = $region17
    $region16: #{tpu_custom_call.1} parent=1 // pred_region
      _
    $region17: #{tpu_custom_call.1} parent=1 // pred_fallthru
      _
    // Predicated region
    $region18: #{tpu_custom_call.1} parent=1 // pred_check
      _
    $region19: #{tpu_custom_call.1} parent=1 // pred_check_branch
      %55 = sbr.rel (0) target = $region21
    $region20: #{tpu_custom_call.1} parent=1 // pred_region
      _
    $region21: #{tpu_custom_call.1} parent=1 // pred_fallthru
      _
    // Predicated region
    $region22: #{tpu_custom_call.1} parent=1 // pred_check
      _
    $region23: #{tpu_custom_call.1} parent=1 // pred_check_branch
      %57 = sbr.rel (0) target = $region25
    $region24: #{tpu_custom_call.1} parent=1 // pred_region
      _
    $region25: #{tpu_custom_call.1} parent=1 // pred_fallthru
      _
    // Predicated region
    $region26: #{tpu_custom_call.1} parent=1 // pred_check
      _
    $region27: #{tpu_custom_call.1} parent=1 // pred_check_branch
      %59 = sbr.rel (0) target = $region29
    $region28: #{tpu_custom_call.1} parent=1 // pred_region
      %60 = dma.done [#allocation4], 128
    $region29: #{tpu_custom_call.1} parent=1 // pred_fallthru
      _
    // Predicated region
    $region30: #{tpu_custom_call.1} parent=1 // pred_check
      _
    $region31: #{tpu_custom_call.1} parent=1 // pred_check_branch
      %62 = sbr.rel (0) target = $region33
    $region32: #{tpu_custom_call.1} parent=1 // pred_region
      %63 = dma.done [#allocation7], 1024
    $region33: #{tpu_custom_call.1} parent=1 // pred_fallthru
      _
    // Predicated region
    $region34: #{tpu_custom_call.1} parent=1 // pred_check
      _
    $region35: #{tpu_custom_call.1} parent=1 // pred_check_branch
      %65 = sbr.rel (0) target = $region37
    $region36: #{tpu_custom_call.1} parent=1 // pred_region
      %66 = dma.done [#allocation7], 1024
    $region37: #{tpu_custom_call.1} parent=1 // pred_fallthru
      _
    %v68 = vld [vmem:[#allocation6] sm:$0xf]
    %v69 = vld [vmem:[#allocation6 + $0x4] sm:$0xf]
    %v70 = vld [vmem:[#allocation6 + $0x8] sm:$0xf]
    %v71 = vld [vmem:[#allocation6 + $0xc] sm:$0xf]
    %v72 = vld [vmem:[#allocation6 + $0x10] sm:$0xf]
    %v73 = vld [vmem:[#allocation6 + $0x14] sm:$0xf]
    %v74 = vld [vmem:[#allocation6 + $0x18] sm:$0xf]
    %v75 = vld [vmem:[#allocation6 + $0x1c] sm:$0xf]
    %v76 = vld [vmem:[#allocation6 + $0x20] sm:$0xf]
    %v77 = vld [vmem:[#allocation6 + $0x24] sm:$0xf]
    %v78 = vld [vmem:[#allocation6 + $0x28] sm:$0xf]
    %v79 = vld [vmem:[#allocation6 + $0x2c] sm:$0xf]
    %v80 = vld [vmem:[#allocation6 + $0x30] sm:$0xf]
    %v81 = vld [vmem:[#allocation6 + $0x34] sm:$0xf]
    %v82 = vld [vmem:[#allocation6 + $0x38] sm:$0xf]
    %v83 = vld [vmem:[#allocation6 + $0x3c] sm:$0xf]
    %v84 = vld [vmem:[#allocation8] sm:$0xf]
    %v85 = vld [vmem:[#allocation8 + $0x4] sm:$0xf]
    %v86 = vld [vmem:[#allocation8 + $0x8] sm:$0xf]
    %v87 = vld [vmem:[#allocation8 + $0xc] sm:$0xf]
    %v88 = vld [vmem:[#allocation8 + $0x10] sm:$0xf]
    %v89 = vld [vmem:[#allocation8 + $0x14] sm:$0xf]
    %v90 = vld [vmem:[#allocation8 + $0x18] sm:$0xf]
    %v91 = vld [vmem:[#allocation8 + $0x1c] sm:$0xf]
    %v92 = vld [vmem:[#allocation8 + $0x20] sm:$0xf]
    %v93 = vld [vmem:[#allocation8 + $0x24] sm:$0xf]
    %v94 = vld [vmem:[#allocation8 + $0x28] sm:$0xf]
    %v95 = vld [vmem:[#allocation8 + $0x2c] sm:$0xf]
    %v96 = vld [vmem:[#allocation8 + $0x30] sm:$0xf]
    %v97 = vld [vmem:[#allocation8 + $0x34] sm:$0xf]
    %v98 = vld [vmem:[#allocation8 + $0x38] sm:$0xf]
    %v99 = vld [vmem:[#allocation8 + $0x3c] sm:$0xf]
    %v100 = vld [vmem:[%s3] sm:$0x1]
    %v101 = vld [vmem:[%s4] sm:$0x1]
    %v102 = vld [vmem:[#allocation2] sm:$0x1]
    loop: start=0, step=1, limit=2
    $region38: #{tpu_custom_call.1} parent=1 // loop_pre_header
      _
    $region39: #{tpu_custom_call.1} parent=1 // loop_header
      %s104 = sphi 0, %s108
      %p105 = scmp.ge.s32.totalorder %s104, 2
    $region40: #{tpu_custom_call.1} parent=1 // loop_header_branch
      %107 = sbr.rel (%p105) target = $region44
    $region41: #{tpu_custom_call.1} parent=1 // loop_body
      %s109 = smul.u32 %s104, 8
      %s110 = sshra.s32 %s109, 3
      %s111 = sand.u32 %s109, 7
      %s112 = smul.addr %s110, 4
      %s113 = scalar_lea.vmem [#allocation3], %s112
      %v114 = vld [vmem:[%s113] sm:$0xf]
      %v117 = vunpack.c.l.s4 1966171168
      %v118 = vunpack.c.0.s8 %v117
      %v119 = vlaneseq
      %v120 = vshrl.u32 %v119, 7
      %v121 = vsub.s32 %v118, %v120
      %v122 = vrot.slane %v114, %v121
      %v123 = vcombine.high %v122, %v122
      %v125 = vunpack.c.l.s4 1966171168
      %v126 = vunpack.c.0.s8 %v125
      %v127 = vlaneseq
      %v128 = vshrl.u32 %v127, 7
      %v129 = vsub.s32 %v126, %v128
      %v130 = vrot.slane %v122, %v129
      %v132 = vunpack.c.l.s4 1966171168
      %v133 = vunpack.c.0.s8 %v132
      %v134 = vlaneseq
      %v135 = vshrl.u32 %v134, 7
      %v136 = vsub.s32 %v133, %v135
      %v137 = vrot.slane %v123, %v136
      %v138 = vcombine.high %v130, %v130
      %v139 = vcombine.high %v137, %v137
      %v140 = vunpack.i.l.s16 %v130
      %v141 = vunpack.i.h.s16 %v130
      %v142 = vunpack.i.l.s16 %v137
      %v143 = vunpack.i.h.s16 %v137
      %v144 = vunpack.i.l.s16 %v138
      %v145 = vunpack.i.h.s16 %v138
      %v146 = vunpack.i.l.s16 %v139
      %v147 = vunpack.i.h.s16 %v139
      %v148 = vpack.i.b16 %v140, %v140
      %v149 = vpack.i.b16 %v141, %v141
      %v150 = vpack.i.b16 %v142, %v142
      %v151 = vpack.i.b16 %v143, %v143
      %v152 = vpack.i.b16 %v144, %v144
      %v153 = vpack.i.b16 %v145, %v145
      %v154 = vpack.i.b16 %v146, %v146
      %v155 = vpack.i.b16 %v147, %v147
      %v156 = vlaneseq
      %v157 = vshrl.u32 %v156, 7
      %v158 = vsub.s32 0, %v157
      %v159 = vrot.slane %v148, %v158
      %v160 = vlaneseq
      %v161 = vshrl.u32 %v160, 7
      %v162 = vsub.s32 0, %v161
      %v163 = vrot.slane %v149, %v162
      %v164 = vlaneseq
      %v165 = vshrl.u32 %v164, 7
      %v166 = vsub.s32 0, %v165
      %v167 = vrot.slane %v150, %v166
      %v168 = vlaneseq
      %v169 = vshrl.u32 %v168, 7
      %v170 = vsub.s32 0, %v169
      %v171 = vrot.slane %v151, %v170
      %v172 = vlaneseq
      %v173 = vshrl.u32 %v172, 7
      %v174 = vsub.s32 0, %v173
      %v175 = vrot.slane %v152, %v174
      %v176 = vlaneseq
      %v177 = vshrl.u32 %v176, 7
      %v178 = vsub.s32 0, %v177
      %v179 = vrot.slane %v153, %v178
      %v180 = vlaneseq
      %v181 = vshrl.u32 %v180, 7
      %v182 = vsub.s32 0, %v181
      %v183 = vrot.slane %v154, %v182
      %v184 = vlaneseq
      %v185 = vshrl.u32 %v184, 7
      %v186 = vsub.s32 0, %v185
      %v187 = vrot.slane %v155, %v186
      %v189 = vpack.i.b16 %v159, %v159
      %v191 = vlaneseq
      %v192 = vshrl.u32 %v191, 7
      %v193 = vsub.s32 0, %v192
      %v194 = vrot.slane %v189, %v193
      %v196 = vpack.i.b16 %v163, %v163
      %v198 = vlaneseq
      %v199 = vshrl.u32 %v198, 7
      %v200 = vsub.s32 0, %v199
      %v201 = vrot.slane %v196, %v200
      %v203 = vpack.i.b16 %v167, %v167
      %v205 = vlaneseq
      %v206 = vshrl.u32 %v205, 7
      %v207 = vsub.s32 0, %v206
      %v208 = vrot.slane %v203, %v207
      %v210 = vpack.i.b16 %v171, %v171
      %v212 = vlaneseq
      %v213 = vshrl.u32 %v212, 7
      %v214 = vsub.s32 0, %v213
      %v215 = vrot.slane %v210, %v214
      %v217 = vpack.i.b16 %v175, %v175
      %v219 = vlaneseq
      %v220 = vshrl.u32 %v219, 7
      %v221 = vsub.s32 0, %v220
      %v222 = vrot.slane %v217, %v221
      %v224 = vpack.i.b16 %v179, %v179
      %v226 = vlaneseq
      %v227 = vshrl.u32 %v226, 7
      %v228 = vsub.s32 0, %v227
      %v229 = vrot.slane %v224, %v228
      %v231 = vpack.i.b16 %v183, %v183
      %v233 = vlaneseq
      %v234 = vshrl.u32 %v233, 7
      %v235 = vsub.s32 0, %v234
      %v236 = vrot.slane %v231, %v235
      %v238 = vpack.i.b16 %v187, %v187
      %v240 = vlaneseq
      %v241 = vshrl.u32 %v240, 7
      %v242 = vsub.s32 0, %v241
      %v243 = vrot.slane %v238, %v242
      %v260 = vunpack.c.l.b16 %v68
      %v261 = vunpack.c.l.b16 %v69
      %v262 = vunpack.c.l.b16 %v70
      %v263 = vunpack.c.l.b16 %v71
      %v264 = vunpack.c.l.b16 %v72
      %v265 = vunpack.c.l.b16 %v73
      %v266 = vunpack.c.l.b16 %v74
      %v267 = vunpack.c.l.b16 %v75
      %v268 = vunpack.c.l.b16 %v76
      %v269 = vunpack.c.l.b16 %v77
      %v270 = vunpack.c.l.b16 %v78
      %v271 = vunpack.c.l.b16 %v79
      %v272 = vunpack.c.l.b16 %v80
      %v273 = vunpack.c.l.b16 %v81
      %v274 = vunpack.c.l.b16 %v82
      %v275 = vunpack.c.l.b16 %v83
      %v276 = vpack.c.b16 %v261, %v260
      %v277 = vpack.c.b16 %v263, %v262
      %v278 = vpack.c.b16 %v265, %v264
      %v279 = vpack.c.b16 %v267, %v266
      %v280 = vpack.c.b16 %v269, %v268
      %v281 = vpack.c.b16 %v271, %v270
      %v282 = vpack.c.b16 %v273, %v272
      %v283 = vpack.c.b16 %v275, %v274
      %v292 = vadd.bf16 %v194, %v276
      %v293 = vadd.bf16 %v194, %v277
      %v294 = vadd.bf16 %v194, %v278
      %v295 = vadd.bf16 %v194, %v279
      %v296 = vadd.bf16 %v194, %v280
      %v297 = vadd.bf16 %v194, %v281
      %v298 = vadd.bf16 %v194, %v282
      %v299 = vadd.bf16 %v194, %v283
      %v300 = vadd.bf16 %v201, %v276
      %v301 = vadd.bf16 %v201, %v277
      %v302 = vadd.bf16 %v201, %v278
      %v303 = vadd.bf16 %v201, %v279
      %v304 = vadd.bf16 %v201, %v280
      %v305 = vadd.bf16 %v201, %v281
      %v306 = vadd.bf16 %v201, %v282
      %v307 = vadd.bf16 %v201, %v283
      %v308 = vadd.bf16 %v208, %v276
      %v309 = vadd.bf16 %v208, %v277
      %v310 = vadd.bf16 %v208, %v278
      %v311 = vadd.bf16 %v208, %v279
      %v312 = vadd.bf16 %v208, %v280
      %v313 = vadd.bf16 %v208, %v281
      %v314 = vadd.bf16 %v208, %v282
      %v315 = vadd.bf16 %v208, %v283
      %v316 = vadd.bf16 %v215, %v276
      %v317 = vadd.bf16 %v215, %v277
      %v318 = vadd.bf16 %v215, %v278
      %v319 = vadd.bf16 %v215, %v279
      %v320 = vadd.bf16 %v215, %v280
      %v321 = vadd.bf16 %v215, %v281
      %v322 = vadd.bf16 %v215, %v282
      %v323 = vadd.bf16 %v215, %v283
      %v324 = vadd.bf16 %v222, %v276
      %v325 = vadd.bf16 %v222, %v277
      %v326 = vadd.bf16 %v222, %v278
      %v327 = vadd.bf16 %v222, %v279
      %v328 = vadd.bf16 %v222, %v280
      %v329 = vadd.bf16 %v222, %v281
      %v330 = vadd.bf16 %v222, %v282
      %v331 = vadd.bf16 %v222, %v283
      %v332 = vadd.bf16 %v229, %v276
      %v333 = vadd.bf16 %v229, %v277
      %v334 = vadd.bf16 %v229, %v278
      %v335 = vadd.bf16 %v229, %v279
      %v336 = vadd.bf16 %v229, %v280
      %v337 = vadd.bf16 %v229, %v281
      %v338 = vadd.bf16 %v229, %v282
      %v339 = vadd.bf16 %v229, %v283
      %v340 = vadd.bf16 %v236, %v276
      %v341 = vadd.bf16 %v236, %v277
      %v342 = vadd.bf16 %v236, %v278
      %v343 = vadd.bf16 %v236, %v279
      %v344 = vadd.bf16 %v236, %v280
      %v345 = vadd.bf16 %v236, %v281
      %v346 = vadd.bf16 %v236, %v282
      %v347 = vadd.bf16 %v236, %v283
      %v348 = vadd.bf16 %v243, %v276
      %v349 = vadd.bf16 %v243, %v277
      %v350 = vadd.bf16 %v243, %v278
      %v351 = vadd.bf16 %v243, %v279
      %v352 = vadd.bf16 %v243, %v280
      %v353 = vadd.bf16 %v243, %v281
      %v354 = vadd.bf16 %v243, %v282
      %v355 = vadd.bf16 %v243, %v283
      %v356 = vmax.bf16 %v292, 0
      %v357 = vmax.bf16 %v293, 0
      %v358 = vmax.bf16 %v294, 0
      %v359 = vmax.bf16 %v295, 0
      %v360 = vmax.bf16 %v296, 0
      %v361 = vmax.bf16 %v297, 0
      %v362 = vmax.bf16 %v298, 0
      %v363 = vmax.bf16 %v299, 0
      %v364 = vmax.bf16 %v300, 0
      %v365 = vmax.bf16 %v301, 0
      %v366 = vmax.bf16 %v302, 0
      %v367 = vmax.bf16 %v303, 0
      %v368 = vmax.bf16 %v304, 0
      %v369 = vmax.bf16 %v305, 0
      %v370 = vmax.bf16 %v306, 0
      %v371 = vmax.bf16 %v307, 0
      %v372 = vmax.bf16 %v308, 0
      %v373 = vmax.bf16 %v309, 0
      %v374 = vmax.bf16 %v310, 0
      %v375 = vmax.bf16 %v311, 0
      %v376 = vmax.bf16 %v312, 0
      %v377 = vmax.bf16 %v313, 0
      %v378 = vmax.bf16 %v314, 0
      %v379 = vmax.bf16 %v315, 0
      %v380 = vmax.bf16 %v316, 0
      %v381 = vmax.bf16 %v317, 0
      %v382 = vmax.bf16 %v318, 0
      %v383 = vmax.bf16 %v319, 0
      %v384 = vmax.bf16 %v320, 0
      %v385 = vmax.bf16 %v321, 0
      %v386 = vmax.bf16 %v322, 0
      %v387 = vmax.bf16 %v323, 0
      %v388 = vmax.bf16 %v324, 0
      %v389 = vmax.bf16 %v325, 0
      %v390 = vmax.bf16 %v326, 0
      %v391 = vmax.bf16 %v327, 0
      %v392 = vmax.bf16 %v328, 0
      %v393 = vmax.bf16 %v329, 0
      %v394 = vmax.bf16 %v330, 0
      %v395 = vmax.bf16 %v331, 0
      %v396 = vmax.bf16 %v332, 0
      %v397 = vmax.bf16 %v333, 0
      %v398 = vmax.bf16 %v334, 0
      %v399 = vmax.bf16 %v335, 0
      %v400 = vmax.bf16 %v336, 0
      %v401 = vmax.bf16 %v337, 0
      %v402 = vmax.bf16 %v338, 0
      %v403 = vmax.bf16 %v339, 0
      %v404 = vmax.bf16 %v340, 0
      %v405 = vmax.bf16 %v341, 0
      %v406 = vmax.bf16 %v342, 0
      %v407 = vmax.bf16 %v343, 0
      %v408 = vmax.bf16 %v344, 0
      %v409 = vmax.bf16 %v345, 0
      %v410 = vmax.bf16 %v346, 0
      %v411 = vmax.bf16 %v347, 0
      %v412 = vmax.bf16 %v348, 0
      %v413 = vmax.bf16 %v349, 0
      %v414 = vmax.bf16 %v350, 0
      %v415 = vmax.bf16 %v351, 0
      %v416 = vmax.bf16 %v352, 0
      %v417 = vmax.bf16 %v353, 0
      %v418 = vmax.bf16 %v354, 0
      %v419 = vmax.bf16 %v355, 0
      %v421 = vlaneseq
      %v422 = vshrl.u32 %v421, 7
      %v423 = vsub.s32 0, %v422
      %v424 = vrot.slane %v100, %v423
      %v442 = vunpack.c.l.b16 %v84
      %v443 = vunpack.c.l.b16 %v85
      %v444 = vunpack.c.l.b16 %v86
      %v445 = vunpack.c.l.b16 %v87
      %v446 = vunpack.c.l.b16 %v88
      %v447 = vunpack.c.l.b16 %v89
      %v448 = vunpack.c.l.b16 %v90
      %v449 = vunpack.c.l.b16 %v91
      %v450 = vunpack.c.l.b16 %v92
      %v451 = vunpack.c.l.b16 %v93
      %v452 = vunpack.c.l.b16 %v94
      %v453 = vunpack.c.l.b16 %v95
      %v454 = vunpack.c.l.b16 %v96
      %v455 = vunpack.c.l.b16 %v97
      %v456 = vunpack.c.l.b16 %v98
      %v457 = vunpack.c.l.b16 %v99
      %v458 = vpack.c.b16 %v443, %v442
      %v459 = vpack.c.b16 %v445, %v444
      %v460 = vpack.c.b16 %v447, %v446
      %v461 = vpack.c.b16 %v449, %v448
      %v462 = vpack.c.b16 %v451, %v450
      %v463 = vpack.c.b16 %v453, %v452
      %v464 = vpack.c.b16 %v455, %v454
      %v465 = vpack.c.b16 %v457, %v456
      %474 = vmatprep.subr.bf16.mxu0 0
      %475 = vmatpush1.bf16.msra.mxu0 %v465
      %476 = vmatprep.subr.bf16.mxu0 0
      %477 = vmatpush1.bf16.msra.mxu0 %v464
      %478 = vmatprep.subr.bf16.mxu0 0
      %479 = vmatpush1.bf16.msra.mxu0 %v463
      %480 = vmatprep.subr.bf16.mxu0 0
      %481 = vmatpush1.bf16.msra.mxu0 %v462
      %482 = vmatprep.subr.bf16.mxu0 0
      %483 = vmatpush1.bf16.msra.mxu0 %v461
      %484 = vmatprep.subr.bf16.mxu0 0
      %485 = vmatpush1.bf16.msra.mxu0 %v460
      %486 = vmatprep.subr.bf16.mxu0 0
      %487 = vmatpush1.bf16.msra.mxu0 %v459
      %488 = vmatprep.subr.bf16.mxu0 0
      %489 = vmatpush1.bf16.msra.mxu0 %v458
      %490 = vmatprep.subr.bf16.mxu0 0
      %491 = vmatpush2.bf16.msra.mxu0 0
      %492 = vmatprep.subr.bf16.mxu0 0
      %493 = vmatpush2.bf16.msra.mxu0 0
      %494 = vmatprep.subr.bf16.mxu0 0
      %495 = vmatpush2.bf16.msra.mxu0 0
      %496 = vmatprep.subr.bf16.mxu0 0
      %497 = vmatpush2.bf16.msra.mxu0 0
      %498 = vmatprep.subr.bf16.mxu0 0
      %499 = vmatpush2.bf16.msra.mxu0 0
      %500 = vmatprep.subr.bf16.mxu0 0
      %501 = vmatpush2.bf16.msra.mxu0 0
      %502 = vmatprep.subr.bf16.mxu0 0
      %503 = vmatpush2.bf16.msra.mxu0 0
      %504 = vmatprep.subr.bf16.mxu0 0
      %505 = vmatpush2.bf16.msra.mxu0 0
      %506 = vmatprep.mubr.bf16.mxu0 0
      %507 = vmatmul.mubr.bf16.gmra.mxu0 %v356
      %v508 = vpop.f32.mrf.mxu0
      %v509 = vadd.f32 %v424, %v508
      %v510 = vpop.f32.mrf.mxu0
      %v511 = vpop.f32.mrf.mxu0
      %v512 = vadd.f32 %v424, %v511
      %v513 = vpop.f32.mrf.mxu0
      %514 = vmatprep.mubr.bf16.mxu0 0
      %515 = vmatmul.mubr.bf16.gmra.mxu0 %v357
      %v516 = vpop.f32.mrf.mxu0
      %v517 = vadd.f32 %v424, %v516
      %v518 = vpop.f32.mrf.mxu0
      %v519 = vpop.f32.mrf.mxu0
      %v520 = vadd.f32 %v424, %v519
      %v521 = vpop.f32.mrf.mxu0
      %522 = vmatprep.mubr.bf16.mxu0 0
      %523 = vmatmul.mubr.bf16.gmra.mxu0 %v358
      %v524 = vpop.f32.mrf.mxu0
      %v525 = vadd.f32 %v424, %v524
      %v526 = vpop.f32.mrf.mxu0
      %v527 = vpop.f32.mrf.mxu0
      %v528 = vadd.f32 %v424, %v527
      %v529 = vpop.f32.mrf.mxu0
      %530 = vmatprep.mubr.bf16.mxu0 0
      %531 = vmatmul.mubr.bf16.gmra.mxu0 %v359
      %v532 = vpop.f32.mrf.mxu0
      %v533 = vadd.f32 %v424, %v532
      %v534 = vpop.f32.mrf.mxu0
      %v535 = vpop.f32.mrf.mxu0
      %v536 = vadd.f32 %v424, %v535
      %v537 = vpop.f32.mrf.mxu0
      %538 = vmatprep.mubr.bf16.mxu0 0
      %539 = vmatmul.mubr.bf16.gmra.mxu0 %v360
      %v540 = vpop.f32.mrf.mxu0
      %v541 = vadd.f32 %v424, %v540
      %v542 = vpop.f32.mrf.mxu0
      %v543 = vpop.f32.mrf.mxu0
      %v544 = vadd.f32 %v424, %v543
      %v545 = vpop.f32.mrf.mxu0
      %546 = vmatprep.mubr.bf16.mxu0 0
      %547 = vmatmul.mubr.bf16.gmra.mxu0 %v361
      %v548 = vpop.f32.mrf.mxu0
      %v549 = vadd.f32 %v424, %v548
      %v550 = vpop.f32.mrf.mxu0
      %v551 = vpop.f32.mrf.mxu0
      %v552 = vadd.f32 %v424, %v551
      %v553 = vpop.f32.mrf.mxu0
      %554 = vmatprep.mubr.bf16.mxu0 0
      %555 = vmatmul.mubr.bf16.gmra.mxu0 %v362
      %v556 = vpop.f32.mrf.mxu0
      %v557 = vadd.f32 %v424, %v556
      %v558 = vpop.f32.mrf.mxu0
      %v559 = vpop.f32.mrf.mxu0
      %v560 = vadd.f32 %v424, %v559
      %v561 = vpop.f32.mrf.mxu0
      %562 = vmatprep.mubr.bf16.mxu0 0
      %563 = vmatmul.mubr.bf16.gmra.mxu0 %v363
      %v564 = vpop.f32.mrf.mxu0
      %v565 = vadd.f32 %v424, %v564
      %v566 = vpop.f32.mrf.mxu0
      %v567 = vpop.f32.mrf.mxu0
      %v568 = vadd.f32 %v424, %v567
      %v569 = vpop.f32.mrf.mxu0
      %570 = vmatprep.mubr.bf16.mxu0 0
      %571 = vmatmul.mubr.bf16.gmra.mxu0 %v364
      %v572 = vpop.f32.mrf.mxu0
      %v573 = vadd.f32 %v424, %v572
      %v574 = vpop.f32.mrf.mxu0
      %v575 = vpop.f32.mrf.mxu0
      %v576 = vadd.f32 %v424, %v575
      %v577 = vpop.f32.mrf.mxu0
      %578 = vmatprep.mubr.bf16.mxu0 0
      %579 = vmatmul.mubr.bf16.gmra.mxu0 %v365
      %v580 = vpop.f32.mrf.mxu0
      %v581 = vadd.f32 %v424, %v580
      %v582 = vpop.f32.mrf.mxu0
      %v583 = vpop.f32.mrf.mxu0
      %v584 = vadd.f32 %v424, %v583
      %v585 = vpop.f32.mrf.mxu0
      %586 = vmatprep.mubr.bf16.mxu0 0
      %587 = vmatmul.mubr.bf16.gmra.mxu0 %v366
      %v588 = vpop.f32.mrf.mxu0
      %v589 = vadd.f32 %v424, %v588
      %v590 = vpop.f32.mrf.mxu0
      %v591 = vpop.f32.mrf.mxu0
      %v592 = vadd.f32 %v424, %v591
      %v593 = vpop.f32.mrf.mxu0
      %594 = vmatprep.mubr.bf16.mxu0 0
      %595 = vmatmul.mubr.bf16.gmra.mxu0 %v367
      %v596 = vpop.f32.mrf.mxu0
      %v597 = vadd.f32 %v424, %v596
      %v598 = vpop.f32.mrf.mxu0
      %v599 = vpop.f32.mrf.mxu0
      %v600 = vadd.f32 %v424, %v599
      %v601 = vpop.f32.mrf.mxu0
      %602 = vmatprep.mubr.bf16.mxu0 0
      %603 = vmatmul.mubr.bf16.gmra.mxu0 %v368
      %v604 = vpop.f32.mrf.mxu0
      %v605 = vadd.f32 %v424, %v604
      %v606 = vpop.f32.mrf.mxu0
      %v607 = vpop.f32.mrf.mxu0
      %v608 = vadd.f32 %v424, %v607
      %v609 = vpop.f32.mrf.mxu0
      %610 = vmatprep.mubr.bf16.mxu0 0
      %611 = vmatmul.mubr.bf16.gmra.mxu0 %v369
      %v612 = vpop.f32.mrf.mxu0
      %v613 = vadd.f32 %v424, %v612
      %v614 = vpop.f32.mrf.mxu0
      %v615 = vpop.f32.mrf.mxu0
      %v616 = vadd.f32 %v424, %v615
      %v617 = vpop.f32.mrf.mxu0
      %618 = vmatprep.mubr.bf16.mxu0 0
      %619 = vmatmul.mubr.bf16.gmra.mxu0 %v370
      %v620 = vpop.f32.mrf.mxu0
      %v621 = vadd.f32 %v424, %v620
      %v622 = vpop.f32.mrf.mxu0
      %v623 = vpop.f32.mrf.mxu0
      %v624 = vadd.f32 %v424, %v623
      %v625 = vpop.f32.mrf.mxu0
      %626 = vmatprep.mubr.bf16.mxu0 0
      %627 = vmatmul.mubr.bf16.gmra.mxu0 %v371
      %v628 = vpop.f32.mrf.mxu0
      %v629 = vadd.f32 %v424, %v628
      %v630 = vpop.f32.mrf.mxu0
      %v631 = vpop.f32.mrf.mxu0
      %v632 = vadd.f32 %v424, %v631
      %v633 = vpop.f32.mrf.mxu0
      %634 = vmatprep.mubr.bf16.mxu0 0
      %635 = vmatmul.mubr.bf16.gmra.mxu0 %v372
      %v636 = vpop.f32.mrf.mxu0
      %v637 = vadd.f32 %v424, %v636
      %v638 = vpop.f32.mrf.mxu0
      %v639 = vpop.f32.mrf.mxu0
      %v640 = vadd.f32 %v424, %v639
      %v641 = vpop.f32.mrf.mxu0
      %642 = vmatprep.mubr.bf16.mxu0 0
      %643 = vmatmul.mubr.bf16.gmra.mxu0 %v373
      %v644 = vpop.f32.mrf.mxu0
      %v645 = vadd.f32 %v424, %v644
      %v646 = vpop.f32.mrf.mxu0
      %v647 = vpop.f32.mrf.mxu0
      %v648 = vadd.f32 %v424, %v647
      %v649 = vpop.f32.mrf.mxu0
      %650 = vmatprep.mubr.bf16.mxu0 0
      %651 = vmatmul.mubr.bf16.gmra.mxu0 %v374
      %v652 = vpop.f32.mrf.mxu0
      %v653 = vadd.f32 %v424, %v652
      %v654 = vpop.f32.mrf.mxu0
      %v655 = vpop.f32.mrf.mxu0
      %v656 = vadd.f32 %v424, %v655
      %v657 = vpop.f32.mrf.mxu0
      %658 = vmatprep.mubr.bf16.mxu0 0
      %659 = vmatmul.mubr.bf16.gmra.mxu0 %v375
      %v660 = vpop.f32.mrf.mxu0
      %v661 = vadd.f32 %v424, %v660
      %v662 = vpop.f32.mrf.mxu0
      %v663 = vpop.f32.mrf.mxu0
      %v664 = vadd.f32 %v424, %v663
      %v665 = vpop.f32.mrf.mxu0
      %666 = vmatprep.mubr.bf16.mxu0 0
      %667 = vmatmul.mubr.bf16.gmra.mxu0 %v376
      %v668 = vpop.f32.mrf.mxu0
      %v669 = vadd.f32 %v424, %v668
      %v670 = vpop.f32.mrf.mxu0
      %v671 = vpop.f32.mrf.mxu0
      %v672 = vadd.f32 %v424, %v671
      %v673 = vpop.f32.mrf.mxu0
      %674 = vmatprep.mubr.bf16.mxu0 0
      %675 = vmatmul.mubr.bf16.gmra.mxu0 %v377
      %v676 = vpop.f32.mrf.mxu0
      %v677 = vadd.f32 %v424, %v676
      %v678 = vpop.f32.mrf.mxu0
      %v679 = vpop.f32.mrf.mxu0
      %v680 = vadd.f32 %v424, %v679
      %v681 = vpop.f32.mrf.mxu0
      %682 = vmatprep.mubr.bf16.mxu0 0
      %683 = vmatmul.mubr.bf16.gmra.mxu0 %v378
      %v684 = vpop.f32.mrf.mxu0
      %v685 = vadd.f32 %v424, %v684
      %v686 = vpop.f32.mrf.mxu0
      %v687 = vpop.f32.mrf.mxu0
      %v688 = vadd.f32 %v424, %v687
      %v689 = vpop.f32.mrf.mxu0
      %690 = vmatprep.mubr.bf16.mxu0 0
      %691 = vmatmul.mubr.bf16.gmra.mxu0 %v379
      %v692 = vpop.f32.mrf.mxu0
      %v693 = vadd.f32 %v424, %v692
      %v694 = vpop.f32.mrf.mxu0
      %v695 = vpop.f32.mrf.mxu0
      %v696 = vadd.f32 %v424, %v695
      %v697 = vpop.f32.mrf.mxu0
      %698 = vmatprep.mubr.bf16.mxu0 0
      %699 = vmatmul.mubr.bf16.gmra.mxu0 %v380
      %v700 = vpop.f32.mrf.mxu0
      %v701 = vadd.f32 %v424, %v700
      %v702 = vpop.f32.mrf.mxu0
      %v703 = vpop.f32.mrf.mxu0
      %v704 = vadd.f32 %v424, %v703
      %v705 = vpop.f32.mrf.mxu0
      %706 = vmatprep.mubr.bf16.mxu0 0
      %707 = vmatmul.mubr.bf16.gmra.mxu0 %v381
      %v708 = vpop.f32.mrf.mxu0
      %v709 = vadd.f32 %v424, %v708
      %v710 = vpop.f32.mrf.mxu0
      %v711 = vpop.f32.mrf.mxu0
      %v712 = vadd.f32 %v424, %v711
      %v713 = vpop.f32.mrf.mxu0
      %714 = vmatprep.mubr.bf16.mxu0 0
      %715 = vmatmul.mubr.bf16.gmra.mxu0 %v382
      %v716 = vpop.f32.mrf.mxu0
      %v717 = vadd.f32 %v424, %v716
      %v718 = vpop.f32.mrf.mxu0
      %v719 = vpop.f32.mrf.mxu0
      %v720 = vadd.f32 %v424, %v719
      %v721 = vpop.f32.mrf.mxu0
      %722 = vmatprep.mubr.bf16.mxu0 0
      %723 = vmatmul.mubr.bf16.gmra.mxu0 %v383
      %v724 = vpop.f32.mrf.mxu0
      %v725 = vadd.f32 %v424, %v724
      %v726 = vpop.f32.mrf.mxu0
      %v727 = vpop.f32.mrf.mxu0
      %v728 = vadd.f32 %v424, %v727
      %v729 = vpop.f32.mrf.mxu0
      %730 = vmatprep.mubr.bf16.mxu0 0
      %731 = vmatmul.mubr.bf16.gmra.mxu0 %v384
      %v732 = vpop.f32.mrf.mxu0
      %v733 = vadd.f32 %v424, %v732
      %v734 = vpop.f32.mrf.mxu0
      %v735 = vpop.f32.mrf.mxu0
      %v736 = vadd.f32 %v424, %v735
      %v737 = vpop.f32.mrf.mxu0
      %738 = vmatprep.mubr.bf16.mxu0 0
      %739 = vmatmul.mubr.bf16.gmra.mxu0 %v385
      %v740 = vpop.f32.mrf.mxu0
      %v741 = vadd.f32 %v424, %v740
      %v742 = vpop.f32.mrf.mxu0
      %v743 = vpop.f32.mrf.mxu0
      %v744 = vadd.f32 %v424, %v743
      %v745 = vpop.f32.mrf.mxu0
      %746 = vmatprep.mubr.bf16.mxu0 0
      %747 = vmatmul.mubr.bf16.gmra.mxu0 %v386
      %v748 = vpop.f32.mrf.mxu0
      %v749 = vadd.f32 %v424, %v748
      %v750 = vpop.f32.mrf.mxu0
      %v751 = vpop.f32.mrf.mxu0
      %v752 = vadd.f32 %v424, %v751
      %v753 = vpop.f32.mrf.mxu0
      %754 = vmatprep.mubr.bf16.mxu0 0
      %755 = vmatmul.mubr.bf16.gmra.mxu0 %v387
      %v756 = vpop.f32.mrf.mxu0
      %v757 = vadd.f32 %v424, %v756
      %v758 = vpop.f32.mrf.mxu0
      %v759 = vpop.f32.mrf.mxu0
      %v760 = vadd.f32 %v424, %v759
      %v761 = vpop.f32.mrf.mxu0
      %762 = vmatprep.mubr.bf16.mxu0 0
      %763 = vmatmul.mubr.bf16.gmra.mxu0 %v388
      %v764 = vpop.f32.mrf.mxu0
      %v765 = vadd.f32 %v424, %v764
      %v766 = vpop.f32.mrf.mxu0
      %v767 = vpop.f32.mrf.mxu0
      %v768 = vadd.f32 %v424, %v767
      %v769 = vpop.f32.mrf.mxu0
      %770 = vmatprep.mubr.bf16.mxu0 0
      %771 = vmatmul.mubr.bf16.gmra.mxu0 %v389
      %v772 = vpop.f32.mrf.mxu0
      %v773 = vadd.f32 %v424, %v772
      %v774 = vpop.f32.mrf.mxu0
      %v775 = vpop.f32.mrf.mxu0
      %v776 = vadd.f32 %v424, %v775
      %v777 = vpop.f32.mrf.mxu0
      %778 = vmatprep.mubr.bf16.mxu0 0
      %779 = vmatmul.mubr.bf16.gmra.mxu0 %v390
      %v780 = vpop.f32.mrf.mxu0
      %v781 = vadd.f32 %v424, %v780
      %v782 = vpop.f32.mrf.mxu0
      %v783 = vpop.f32.mrf.mxu0
      %v784 = vadd.f32 %v424, %v783
      %v785 = vpop.f32.mrf.mxu0
      %786 = vmatprep.mubr.bf16.mxu0 0
      %787 = vmatmul.mubr.bf16.gmra.mxu0 %v391
      %v788 = vpop.f32.mrf.mxu0
      %v789 = vadd.f32 %v424, %v788
      %v790 = vpop.f32.mrf.mxu0
      %v791 = vpop.f32.mrf.mxu0
      %v792 = vadd.f32 %v424, %v791
      %v793 = vpop.f32.mrf.mxu0
      %794 = vmatprep.mubr.bf16.mxu0 0
      %795 = vmatmul.mubr.bf16.gmra.mxu0 %v392
      %v796 = vpop.f32.mrf.mxu0
      %v797 = vadd.f32 %v424, %v796
      %v798 = vpop.f32.mrf.mxu0
      %v799 = vpop.f32.mrf.mxu0
      %v800 = vadd.f32 %v424, %v799
      %v801 = vpop.f32.mrf.mxu0
      %802 = vmatprep.mubr.bf16.mxu0 0
      %803 = vmatmul.mubr.bf16.gmra.mxu0 %v393
      %v804 = vpop.f32.mrf.mxu0
      %v805 = vadd.f32 %v424, %v804
      %v806 = vpop.f32.mrf.mxu0
      %v807 = vpop.f32.mrf.mxu0
      %v808 = vadd.f32 %v424, %v807
      %v809 = vpop.f32.mrf.mxu0
      %810 = vmatprep.mubr.bf16.mxu0 0
      %811 = vmatmul.mubr.bf16.gmra.mxu0 %v394
      %v812 = vpop.f32.mrf.mxu0
      %v813 = vadd.f32 %v424, %v812
      %v814 = vpop.f32.mrf.mxu0
      %v815 = vpop.f32.mrf.mxu0
      %v816 = vadd.f32 %v424, %v815
      %v817 = vpop.f32.mrf.mxu0
      %818 = vmatprep.mubr.bf16.mxu0 0
      %819 = vmatmul.mubr.bf16.gmra.mxu0 %v395
      %v820 = vpop.f32.mrf.mxu0
      %v821 = vadd.f32 %v424, %v820
      %v822 = vpop.f32.mrf.mxu0
      %v823 = vpop.f32.mrf.mxu0
      %v824 = vadd.f32 %v424, %v823
      %v825 = vpop.f32.mrf.mxu0
      %826 = vmatprep.mubr.bf16.mxu0 0
      %827 = vmatmul.mubr.bf16.gmra.mxu0 %v396
      %v828 = vpop.f32.mrf.mxu0
      %v829 = vadd.f32 %v424, %v828
      %v830 = vpop.f32.mrf.mxu0
      %v831 = vpop.f32.mrf.mxu0
      %v832 = vadd.f32 %v424, %v831
      %v833 = vpop.f32.mrf.mxu0
      %834 = vmatprep.mubr.bf16.mxu0 0
      %835 = vmatmul.mubr.bf16.gmra.mxu0 %v397
      %v836 = vpop.f32.mrf.mxu0
      %v837 = vadd.f32 %v424, %v836
      %v838 = vpop.f32.mrf.mxu0
      %v839 = vpop.f32.mrf.mxu0
      %v840 = vadd.f32 %v424, %v839
      %v841 = vpop.f32.mrf.mxu0
      %842 = vmatprep.mubr.bf16.mxu0 0
      %843 = vmatmul.mubr.bf16.gmra.mxu0 %v398
      %v844 = vpop.f32.mrf.mxu0
      %v845 = vadd.f32 %v424, %v844
      %v846 = vpop.f32.mrf.mxu0
      %v847 = vpop.f32.mrf.mxu0
      %v848 = vadd.f32 %v424, %v847
      %v849 = vpop.f32.mrf.mxu0
      %850 = vmatprep.mubr.bf16.mxu0 0
      %851 = vmatmul.mubr.bf16.gmra.mxu0 %v399
      %v852 = vpop.f32.mrf.mxu0
      %v853 = vadd.f32 %v424, %v852
      %v854 = vpop.f32.mrf.mxu0
      %v855 = vpop.f32.mrf.mxu0
      %v856 = vadd.f32 %v424, %v855
      %v857 = vpop.f32.mrf.mxu0
      %858 = vmatprep.mubr.bf16.mxu0 0
      %859 = vmatmul.mubr.bf16.gmra.mxu0 %v400
      %v860 = vpop.f32.mrf.mxu0
      %v861 = vadd.f32 %v424, %v860
      %v862 = vpop.f32.mrf.mxu0
      %v863 = vpop.f32.mrf.mxu0
      %v864 = vadd.f32 %v424, %v863
      %v865 = vpop.f32.mrf.mxu0
      %866 = vmatprep.mubr.bf16.mxu0 0
      %867 = vmatmul.mubr.bf16.gmra.mxu0 %v401
      %v868 = vpop.f32.mrf.mxu0
      %v869 = vadd.f32 %v424, %v868
      %v870 = vpop.f32.mrf.mxu0
      %v871 = vpop.f32.mrf.mxu0
      %v872 = vadd.f32 %v424, %v871
      %v873 = vpop.f32.mrf.mxu0
      %874 = vmatprep.mubr.bf16.mxu0 0
      %875 = vmatmul.mubr.bf16.gmra.mxu0 %v402
      %v876 = vpop.f32.mrf.mxu0
      %v877 = vadd.f32 %v424, %v876
      %v878 = vpop.f32.mrf.mxu0
      %v879 = vpop.f32.mrf.mxu0
      %v880 = vadd.f32 %v424, %v879
      %v881 = vpop.f32.mrf.mxu0
      %882 = vmatprep.mubr.bf16.mxu0 0
      %883 = vmatmul.mubr.bf16.gmra.mxu0 %v403
      %v884 = vpop.f32.mrf.mxu0
      %v885 = vadd.f32 %v424, %v884
      %v886 = vpop.f32.mrf.mxu0
      %v887 = vpop.f32.mrf.mxu0
      %v888 = vadd.f32 %v424, %v887
      %v889 = vpop.f32.mrf.mxu0
      %890 = vmatprep.mubr.bf16.mxu0 0
      %891 = vmatmul.mubr.bf16.gmra.mxu0 %v404
      %v892 = vpop.f32.mrf.mxu0
      %v893 = vadd.f32 %v424, %v892
      %v894 = vpop.f32.mrf.mxu0
      %v895 = vpop.f32.mrf.mxu0
      %v896 = vadd.f32 %v424, %v895
      %v897 = vpop.f32.mrf.mxu0
      %898 = vmatprep.mubr.bf16.mxu0 0
      %899 = vmatmul.mubr.bf16.gmra.mxu0 %v405
      %v900 = vpop.f32.mrf.mxu0
      %v901 = vadd.f32 %v424, %v900
      %v902 = vpop.f32.mrf.mxu0
      %v903 = vpop.f32.mrf.mxu0
      %v904 = vadd.f32 %v424, %v903
      %v905 = vpop.f32.mrf.mxu0
      %906 = vmatprep.mubr.bf16.mxu0 0
      %907 = vmatmul.mubr.bf16.gmra.mxu0 %v406
      %v908 = vpop.f32.mrf.mxu0
      %v909 = vadd.f32 %v424, %v908
      %v910 = vpop.f32.mrf.mxu0
      %v911 = vpop.f32.mrf.mxu0
      %v912 = vadd.f32 %v424, %v911
      %v913 = vpop.f32.mrf.mxu0
      %914 = vmatprep.mubr.bf16.mxu0 0
      %915 = vmatmul.mubr.bf16.gmra.mxu0 %v407
      %v916 = vpop.f32.mrf.mxu0
      %v917 = vadd.f32 %v424, %v916
      %v918 = vpop.f32.mrf.mxu0
      %v919 = vpop.f32.mrf.mxu0
      %v920 = vadd.f32 %v424, %v919
      %v921 = vpop.f32.mrf.mxu0
      %922 = vmatprep.mubr.bf16.mxu0 0
      %923 = vmatmul.mubr.bf16.gmra.mxu0 %v408
      %v924 = vpop.f32.mrf.mxu0
      %v925 = vadd.f32 %v424, %v924
      %v926 = vpop.f32.mrf.mxu0
      %v927 = vpop.f32.mrf.mxu0
      %v928 = vadd.f32 %v424, %v927
      %v929 = vpop.f32.mrf.mxu0
      %930 = vmatprep.mubr.bf16.mxu0 0
      %931 = vmatmul.mubr.bf16.gmra.mxu0 %v409
      %v932 = vpop.f32.mrf.mxu0
      %v933 = vadd.f32 %v424, %v932
      %v934 = vpop.f32.mrf.mxu0
      %v935 = vpop.f32.mrf.mxu0
      %v936 = vadd.f32 %v424, %v935
      %v937 = vpop.f32.mrf.mxu0
      %938 = vmatprep.mubr.bf16.mxu0 0
      %939 = vmatmul.mubr.bf16.gmra.mxu0 %v410
      %v940 = vpop.f32.mrf.mxu0
      %v941 = vadd.f32 %v424, %v940
      %v942 = vpop.f32.mrf.mxu0
      %v943 = vpop.f32.mrf.mxu0
      %v944 = vadd.f32 %v424, %v943
      %v945 = vpop.f32.mrf.mxu0
      %946 = vmatprep.mubr.bf16.mxu0 0
      %947 = vmatmul.mubr.bf16.gmra.mxu0 %v411
      %v948 = vpop.f32.mrf.mxu0
      %v949 = vadd.f32 %v424, %v948
      %v950 = vpop.f32.mrf.mxu0
      %v951 = vpop.f32.mrf.mxu0
      %v952 = vadd.f32 %v424, %v951
      %v953 = vpop.f32.mrf.mxu0
      %954 = vmatprep.mubr.bf16.mxu0 0
      %955 = vmatmul.mubr.bf16.gmra.mxu0 %v412
      %v956 = vpop.f32.mrf.mxu0
      %v957 = vadd.f32 %v424, %v956
      %v958 = vpop.f32.mrf.mxu0
      %v959 = vpop.f32.mrf.mxu0
      %v960 = vadd.f32 %v424, %v959
      %v961 = vpop.f32.mrf.mxu0
      %962 = vmatprep.mubr.bf16.mxu0 0
      %963 = vmatmul.mubr.bf16.gmra.mxu0 %v413
      %v964 = vpop.f32.mrf.mxu0
      %v965 = vadd.f32 %v424, %v964
      %v966 = vpop.f32.mrf.mxu0
      %v967 = vpop.f32.mrf.mxu0
      %v968 = vadd.f32 %v424, %v967
      %v969 = vpop.f32.mrf.mxu0
      %970 = vmatprep.mubr.bf16.mxu0 0
      %971 = vmatmul.mubr.bf16.gmra.mxu0 %v414
      %v972 = vpop.f32.mrf.mxu0
      %v973 = vadd.f32 %v424, %v972
      %v974 = vpop.f32.mrf.mxu0
      %v975 = vpop.f32.mrf.mxu0
      %v976 = vadd.f32 %v424, %v975
      %v977 = vpop.f32.mrf.mxu0
      %978 = vmatprep.mubr.bf16.mxu0 0
      %979 = vmatmul.mubr.bf16.gmra.mxu0 %v415
      %v980 = vpop.f32.mrf.mxu0
      %v981 = vadd.f32 %v424, %v980
      %v982 = vpop.f32.mrf.mxu0
      %v983 = vpop.f32.mrf.mxu0
      %v984 = vadd.f32 %v424, %v983
      %v985 = vpop.f32.mrf.mxu0
      %986 = vmatprep.mubr.bf16.mxu0 0
      %987 = vmatmul.mubr.bf16.gmra.mxu0 %v416
      %v988 = vpop.f32.mrf.mxu0
      %v989 = vadd.f32 %v424, %v988
      %v990 = vpop.f32.mrf.mxu0
      %v991 = vpop.f32.mrf.mxu0
      %v992 = vadd.f32 %v424, %v991
      %v993 = vpop.f32.mrf.mxu0
      %994 = vmatprep.mubr.bf16.mxu0 0
      %995 = vmatmul.mubr.bf16.gmra.mxu0 %v417
      %v996 = vpop.f32.mrf.mxu0
      %v997 = vadd.f32 %v424, %v996
      %v998 = vpop.f32.mrf.mxu0
      %v999 = vpop.f32.mrf.mxu0
      %v1000 = vadd.f32 %v424, %v999
      %v1001 = vpop.f32.mrf.mxu0
      %1002 = vmatprep.mubr.bf16.mxu0 0
      %1003 = vmatmul.mubr.bf16.gmra.mxu0 %v418
      %v1004 = vpop.f32.mrf.mxu0
      %v1005 = vadd.f32 %v424, %v1004
      %v1006 = vpop.f32.mrf.mxu0
      %v1007 = vpop.f32.mrf.mxu0
      %v1008 = vadd.f32 %v424, %v1007
      %v1009 = vpop.f32.mrf.mxu0
      %1010 = vmatprep.mubr.bf16.mxu0 0
      %1011 = vmatmul.mubr.bf16.gmra.mxu0 %v419
      %v1012 = vpop.f32.mrf.mxu0
      %v1013 = vadd.f32 %v424, %v1012
      %v1014 = vpop.f32.mrf.mxu0
      %v1015 = vpop.f32.mrf.mxu0
      %v1016 = vadd.f32 %v424, %v1015
      %v1017 = vpop.f32.mrf.mxu0
      %1018 = vdwg.mxu0
      %v1019 = vmax.f32 %v509, 0.0
      %v1020 = vmax.f32 %v512, 0.0
      %v1021 = vmax.f32 %v517, 0.0
      %v1022 = vmax.f32 %v520, 0.0
      %v1023 = vmax.f32 %v525, 0.0
      %v1024 = vmax.f32 %v528, 0.0
      %v1025 = vmax.f32 %v533, 0.0
      %v1026 = vmax.f32 %v536, 0.0
      %v1027 = vmax.f32 %v541, 0.0
      %v1028 = vmax.f32 %v544, 0.0
      %v1029 = vmax.f32 %v549, 0.0
      %v1030 = vmax.f32 %v552, 0.0
      %v1031 = vmax.f32 %v557, 0.0
      %v1032 = vmax.f32 %v560, 0.0
      %v1033 = vmax.f32 %v565, 0.0
      %v1034 = vmax.f32 %v568, 0.0
      %v1035 = vmax.f32 %v573, 0.0
      %v1036 = vmax.f32 %v576, 0.0
      %v1037 = vmax.f32 %v581, 0.0
      %v1038 = vmax.f32 %v584, 0.0
      %v1039 = vmax.f32 %v589, 0.0
      %v1040 = vmax.f32 %v592, 0.0
      %v1041 = vmax.f32 %v597, 0.0
      %v1042 = vmax.f32 %v600, 0.0
      %v1043 = vmax.f32 %v605, 0.0
      %v1044 = vmax.f32 %v608, 0.0
      %v1045 = vmax.f32 %v613, 0.0
      %v1046 = vmax.f32 %v616, 0.0
      %v1047 = vmax.f32 %v621, 0.0
      %v1048 = vmax.f32 %v624, 0.0
      %v1049 = vmax.f32 %v629, 0.0
      %v1050 = vmax.f32 %v632, 0.0
      %v1051 = vmax.f32 %v637, 0.0
      %v1052 = vmax.f32 %v640, 0.0
      %v1053 = vmax.f32 %v645, 0.0
      %v1054 = vmax.f32 %v648, 0.0
      %v1055 = vmax.f32 %v653, 0.0
      %v1056 = vmax.f32 %v656, 0.0
      %v1057 = vmax.f32 %v661, 0.0
      %v1058 = vmax.f32 %v664, 0.0
      %v1059 = vmax.f32 %v669, 0.0
      %v1060 = vmax.f32 %v672, 0.0
      %v1061 = vmax.f32 %v677, 0.0
      %v1062 = vmax.f32 %v680, 0.0
      %v1063 = vmax.f32 %v685, 0.0
      %v1064 = vmax.f32 %v688, 0.0
      %v1065 = vmax.f32 %v693, 0.0
      %v1066 = vmax.f32 %v696, 0.0
      %v1067 = vmax.f32 %v701, 0.0
      %v1068 = vmax.f32 %v704, 0.0
      %v1069 = vmax.f32 %v709, 0.0
      %v1070 = vmax.f32 %v712, 0.0
      %v1071 = vmax.f32 %v717, 0.0
      %v1072 = vmax.f32 %v720, 0.0
      %v1073 = vmax.f32 %v725, 0.0
      %v1074 = vmax.f32 %v728, 0.0
      %v1075 = vmax.f32 %v733, 0.0
      %v1076 = vmax.f32 %v736, 0.0
      %v1077 = vmax.f32 %v741, 0.0
      %v1078 = vmax.f32 %v744, 0.0
      %v1079 = vmax.f32 %v749, 0.0
      %v1080 = vmax.f32 %v752, 0.0
      %v1081 = vmax.f32 %v757, 0.0
      %v1082 = vmax.f32 %v760, 0.0
      %v1083 = vmax.f32 %v765, 0.0
      %v1084 = vmax.f32 %v768, 0.0
      %v1085 = vmax.f32 %v773, 0.0
      %v1086 = vmax.f32 %v776, 0.0
      %v1087 = vmax.f32 %v781, 0.0
      %v1088 = vmax.f32 %v784, 0.0
      %v1089 = vmax.f32 %v789, 0.0
      %v1090 = vmax.f32 %v792, 0.0
      %v1091 = vmax.f32 %v797, 0.0
      %v1092 = vmax.f32 %v800, 0.0
      %v1093 = vmax.f32 %v805, 0.0
      %v1094 = vmax.f32 %v808, 0.0
      %v1095 = vmax.f32 %v813, 0.0
      %v1096 = vmax.f32 %v816, 0.0
      %v1097 = vmax.f32 %v821, 0.0
      %v1098 = vmax.f32 %v824, 0.0
      %v1099 = vmax.f32 %v829, 0.0
      %v1100 = vmax.f32 %v832, 0.0
      %v1101 = vmax.f32 %v837, 0.0
      %v1102 = vmax.f32 %v840, 0.0
      %v1103 = vmax.f32 %v845, 0.0
      %v1104 = vmax.f32 %v848, 0.0
      %v1105 = vmax.f32 %v853, 0.0
      %v1106 = vmax.f32 %v856, 0.0
      %v1107 = vmax.f32 %v861, 0.0
      %v1108 = vmax.f32 %v864, 0.0
      %v1109 = vmax.f32 %v869, 0.0
      %v1110 = vmax.f32 %v872, 0.0
      %v1111 = vmax.f32 %v877, 0.0
      %v1112 = vmax.f32 %v880, 0.0
      %v1113 = vmax.f32 %v885, 0.0
      %v1114 = vmax.f32 %v888, 0.0
      %v1115 = vmax.f32 %v893, 0.0
      %v1116 = vmax.f32 %v896, 0.0
      %v1117 = vmax.f32 %v901, 0.0
      %v1118 = vmax.f32 %v904, 0.0
      %v1119 = vmax.f32 %v909, 0.0
      %v1120 = vmax.f32 %v912, 0.0
      %v1121 = vmax.f32 %v917, 0.0
      %v1122 = vmax.f32 %v920, 0.0
      %v1123 = vmax.f32 %v925, 0.0
      %v1124 = vmax.f32 %v928, 0.0
      %v1125 = vmax.f32 %v933, 0.0
      %v1126 = vmax.f32 %v936, 0.0
      %v1127 = vmax.f32 %v941, 0.0
      %v1128 = vmax.f32 %v944, 0.0
      %v1129 = vmax.f32 %v949, 0.0
      %v1130 = vmax.f32 %v952, 0.0
      %v1131 = vmax.f32 %v957, 0.0
      %v1132 = vmax.f32 %v960, 0.0
      %v1133 = vmax.f32 %v965, 0.0
      %v1134 = vmax.f32 %v968, 0.0
      %v1135 = vmax.f32 %v973, 0.0
      %v1136 = vmax.f32 %v976, 0.0
      %v1137 = vmax.f32 %v981, 0.0
      %v1138 = vmax.f32 %v984, 0.0
      %v1139 = vmax.f32 %v989, 0.0
      %v1140 = vmax.f32 %v992, 0.0
      %v1141 = vmax.f32 %v997, 0.0
      %v1142 = vmax.f32 %v1000, 0.0
      %v1143 = vmax.f32 %v1005, 0.0
      %v1144 = vmax.f32 %v1008, 0.0
      %v1145 = vmax.f32 %v1013, 0.0
      %v1146 = vmax.f32 %v1016, 0.0
      %v1148 = vlaneseq
      %v1149 = vshrl.u32 %v1148, 7
      %v1150 = vsub.s32 0, %v1149
      %v1151 = vrot.slane %v101, %v1150
      %v1153 = vmul.f32 %v1019, %v1151
      %v1154 = vmul.f32 %v1020, %v1151
      %v1155 = vmul.f32 %v1021, %v1151
      %v1156 = vmul.f32 %v1022, %v1151
      %v1157 = vmul.f32 %v1023, %v1151
      %v1158 = vmul.f32 %v1024, %v1151
      %v1159 = vmul.f32 %v1025, %v1151
      %v1160 = vmul.f32 %v1026, %v1151
      %v1161 = vmul.f32 %v1027, %v1151
      %v1162 = vmul.f32 %v1028, %v1151
      %v1163 = vmul.f32 %v1029, %v1151
      %v1164 = vmul.f32 %v1030, %v1151
      %v1165 = vmul.f32 %v1031, %v1151
      %v1166 = vmul.f32 %v1032, %v1151
      %v1167 = vmul.f32 %v1033, %v1151
      %v1168 = vmul.f32 %v1034, %v1151
      %v1169 = vmul.f32 %v1035, %v1151
      %v1170 = vmul.f32 %v1036, %v1151
      %v1171 = vmul.f32 %v1037, %v1151
      %v1172 = vmul.f32 %v1038, %v1151
      %v1173 = vmul.f32 %v1039, %v1151
      %v1174 = vmul.f32 %v1040, %v1151
      %v1175 = vmul.f32 %v1041, %v1151
      %v1176 = vmul.f32 %v1042, %v1151
      %v1177 = vmul.f32 %v1043, %v1151
      %v1178 = vmul.f32 %v1044, %v1151
      %v1179 = vmul.f32 %v1045, %v1151
      %v1180 = vmul.f32 %v1046, %v1151
      %v1181 = vmul.f32 %v1047, %v1151
      %v1182 = vmul.f32 %v1048, %v1151
      %v1183 = vmul.f32 %v1049, %v1151
      %v1184 = vmul.f32 %v1050, %v1151
      %v1185 = vmul.f32 %v1051, %v1151
      %v1186 = vmul.f32 %v1052, %v1151
      %v1187 = vmul.f32 %v1053, %v1151
      %v1188 = vmul.f32 %v1054, %v1151
      %v1189 = vmul.f32 %v1055, %v1151
      %v1190 = vmul.f32 %v1056, %v1151
      %v1191 = vmul.f32 %v1057, %v1151
      %v1192 = vmul.f32 %v1058, %v1151
      %v1193 = vmul.f32 %v1059, %v1151
      %v1194 = vmul.f32 %v1060, %v1151
      %v1195 = vmul.f32 %v1061, %v1151
      %v1196 = vmul.f32 %v1062, %v1151
      %v1197 = vmul.f32 %v1063, %v1151
      %v1198 = vmul.f32 %v1064, %v1151
      %v1199 = vmul.f32 %v1065, %v1151
      %v1200 = vmul.f32 %v1066, %v1151
      %v1201 = vmul.f32 %v1067, %v1151
      %v1202 = vmul.f32 %v1068, %v1151
      %v1203 = vmul.f32 %v1069, %v1151
      %v1204 = vmul.f32 %v1070, %v1151
      %v1205 = vmul.f32 %v1071, %v1151
      %v1206 = vmul.f32 %v1072, %v1151
      %v1207 = vmul.f32 %v1073, %v1151
      %v1208 = vmul.f32 %v1074, %v1151
      %v1209 = vmul.f32 %v1075, %v1151
      %v1210 = vmul.f32 %v1076, %v1151
      %v1211 = vmul.f32 %v1077, %v1151
      %v1212 = vmul.f32 %v1078, %v1151
      %v1213 = vmul.f32 %v1079, %v1151
      %v1214 = vmul.f32 %v1080, %v1151
      %v1215 = vmul.f32 %v1081, %v1151
      %v1216 = vmul.f32 %v1082, %v1151
      %v1217 = vmul.f32 %v1083, %v1151
      %v1218 = vmul.f32 %v1084, %v1151
      %v1219 = vmul.f32 %v1085, %v1151
      %v1220 = vmul.f32 %v1086, %v1151
      %v1221 = vmul.f32 %v1087, %v1151
      %v1222 = vmul.f32 %v1088, %v1151
      %v1223 = vmul.f32 %v1089, %v1151
      %v1224 = vmul.f32 %v1090, %v1151
      %v1225 = vmul.f32 %v1091, %v1151
      %v1226 = vmul.f32 %v1092, %v1151
      %v1227 = vmul.f32 %v1093, %v1151
      %v1228 = vmul.f32 %v1094, %v1151
      %v1229 = vmul.f32 %v1095, %v1151
      %v1230 = vmul.f32 %v1096, %v1151
      %v1231 = vmul.f32 %v1097, %v1151
      %v1232 = vmul.f32 %v1098, %v1151
      %v1233 = vmul.f32 %v1099, %v1151
      %v1234 = vmul.f32 %v1100, %v1151
      %v1235 = vmul.f32 %v1101, %v1151
      %v1236 = vmul.f32 %v1102, %v1151
      %v1237 = vmul.f32 %v1103, %v1151
      %v1238 = vmul.f32 %v1104, %v1151
      %v1239 = vmul.f32 %v1105, %v1151
      %v1240 = vmul.f32 %v1106, %v1151
      %v1241 = vmul.f32 %v1107, %v1151
      %v1242 = vmul.f32 %v1108, %v1151
      %v1243 = vmul.f32 %v1109, %v1151
      %v1244 = vmul.f32 %v1110, %v1151
      %v1245 = vmul.f32 %v1111, %v1151
      %v1246 = vmul.f32 %v1112, %v1151
      %v1247 = vmul.f32 %v1113, %v1151
      %v1248 = vmul.f32 %v1114, %v1151
      %v1249 = vmul.f32 %v1115, %v1151
      %v1250 = vmul.f32 %v1116, %v1151
      %v1251 = vmul.f32 %v1117, %v1151
      %v1252 = vmul.f32 %v1118, %v1151
      %v1253 = vmul.f32 %v1119, %v1151
      %v1254 = vmul.f32 %v1120, %v1151
      %v1255 = vmul.f32 %v1121, %v1151
      %v1256 = vmul.f32 %v1122, %v1151
      %v1257 = vmul.f32 %v1123, %v1151
      %v1258 = vmul.f32 %v1124, %v1151
      %v1259 = vmul.f32 %v1125, %v1151
      %v1260 = vmul.f32 %v1126, %v1151
      %v1261 = vmul.f32 %v1127, %v1151
      %v1262 = vmul.f32 %v1128, %v1151
      %v1263 = vmul.f32 %v1129, %v1151
      %v1264 = vmul.f32 %v1130, %v1151
      %v1265 = vmul.f32 %v1131, %v1151
      %v1266 = vmul.f32 %v1132, %v1151
      %v1267 = vmul.f32 %v1133, %v1151
      %v1268 = vmul.f32 %v1134, %v1151
      %v1269 = vmul.f32 %v1135, %v1151
      %v1270 = vmul.f32 %v1136, %v1151
      %v1271 = vmul.f32 %v1137, %v1151
      %v1272 = vmul.f32 %v1138, %v1151
      %v1273 = vmul.f32 %v1139, %v1151
      %v1274 = vmul.f32 %v1140, %v1151
      %v1275 = vmul.f32 %v1141, %v1151
      %v1276 = vmul.f32 %v1142, %v1151
      %v1277 = vmul.f32 %v1143, %v1151
      %v1278 = vmul.f32 %v1144, %v1151
      %v1279 = vmul.f32 %v1145, %v1151
      %v1280 = vmul.f32 %v1146, %v1151
      %1281 = vadd.xlane.f32.xlu0 %v1153
      %v1282 = vpop.xlane.xlu0 %1281
      %1283 = vadd.xlane.f32.xlu0 %v1154
      %v1284 = vpop.xlane.xlu0 %1283
      %1285 = vadd.xlane.f32.xlu0 %v1155
      %v1286 = vpop.xlane.xlu0 %1285
      %1287 = vadd.xlane.f32.xlu0 %v1156
      %v1288 = vpop.xlane.xlu0 %1287
      %1289 = vadd.xlane.f32.xlu0 %v1157
      %v1290 = vpop.xlane.xlu0 %1289
      %1291 = vadd.xlane.f32.xlu0 %v1158
      %v1292 = vpop.xlane.xlu0 %1291
      %1293 = vadd.xlane.f32.xlu0 %v1159
      %v1294 = vpop.xlane.xlu0 %1293
      %1295 = vadd.xlane.f32.xlu0 %v1160
      %v1296 = vpop.xlane.xlu0 %1295
      %1297 = vadd.xlane.f32.xlu0 %v1161
      %v1298 = vpop.xlane.xlu0 %1297
      %1299 = vadd.xlane.f32.xlu0 %v1162
      %v1300 = vpop.xlane.xlu0 %1299
      %1301 = vadd.xlane.f32.xlu0 %v1163
      %v1302 = vpop.xlane.xlu0 %1301
      %1303 = vadd.xlane.f32.xlu0 %v1164
      %v1304 = vpop.xlane.xlu0 %1303
      %1305 = vadd.xlane.f32.xlu0 %v1165
      %v1306 = vpop.xlane.xlu0 %1305
      %1307 = vadd.xlane.f32.xlu0 %v1166
      %v1308 = vpop.xlane.xlu0 %1307
      %1309 = vadd.xlane.f32.xlu0 %v1167
      %v1310 = vpop.xlane.xlu0 %1309
      %1311 = vadd.xlane.f32.xlu0 %v1168
      %v1312 = vpop.xlane.xlu0 %1311
      %1313 = vadd.xlane.f32.xlu0 %v1169
      %v1314 = vpop.xlane.xlu0 %1313
      %1315 = vadd.xlane.f32.xlu0 %v1170
      %v1316 = vpop.xlane.xlu0 %1315
      %1317 = vadd.xlane.f32.xlu0 %v1171
      %v1318 = vpop.xlane.xlu0 %1317
      %1319 = vadd.xlane.f32.xlu0 %v1172
      %v1320 = vpop.xlane.xlu0 %1319
      %1321 = vadd.xlane.f32.xlu0 %v1173
      %v1322 = vpop.xlane.xlu0 %1321
      %1323 = vadd.xlane.f32.xlu0 %v1174
      %v1324 = vpop.xlane.xlu0 %1323
      %1325 = vadd.xlane.f32.xlu0 %v1175
      %v1326 = vpop.xlane.xlu0 %1325
      %1327 = vadd.xlane.f32.xlu0 %v1176
      %v1328 = vpop.xlane.xlu0 %1327
      %1329 = vadd.xlane.f32.xlu0 %v1177
      %v1330 = vpop.xlane.xlu0 %1329
      %1331 = vadd.xlane.f32.xlu0 %v1178
      %v1332 = vpop.xlane.xlu0 %1331
      %1333 = vadd.xlane.f32.xlu0 %v1179
      %v1334 = vpop.xlane.xlu0 %1333
      %1335 = vadd.xlane.f32.xlu0 %v1180
      %v1336 = vpop.xlane.xlu0 %1335
      %1337 = vadd.xlane.f32.xlu0 %v1181
      %v1338 = vpop.xlane.xlu0 %1337
      %1339 = vadd.xlane.f32.xlu0 %v1182
      %v1340 = vpop.xlane.xlu0 %1339
      %1341 = vadd.xlane.f32.xlu0 %v1183
      %v1342 = vpop.xlane.xlu0 %1341
      %1343 = vadd.xlane.f32.xlu0 %v1184
      %v1344 = vpop.xlane.xlu0 %1343
      %1345 = vadd.xlane.f32.xlu0 %v1185
      %v1346 = vpop.xlane.xlu0 %1345
      %1347 = vadd.xlane.f32.xlu0 %v1186
      %v1348 = vpop.xlane.xlu0 %1347
      %1349 = vadd.xlane.f32.xlu0 %v1187
      %v1350 = vpop.xlane.xlu0 %1349
      %1351 = vadd.xlane.f32.xlu0 %v1188
      %v1352 = vpop.xlane.xlu0 %1351
      %1353 = vadd.xlane.f32.xlu0 %v1189
      %v1354 = vpop.xlane.xlu0 %1353
      %1355 = vadd.xlane.f32.xlu0 %v1190
      %v1356 = vpop.xlane.xlu0 %1355
      %1357 = vadd.xlane.f32.xlu0 %v1191
      %v1358 = vpop.xlane.xlu0 %1357
      %1359 = vadd.xlane.f32.xlu0 %v1192
      %v1360 = vpop.xlane.xlu0 %1359
      %1361 = vadd.xlane.f32.xlu0 %v1193
      %v1362 = vpop.xlane.xlu0 %1361
      %1363 = vadd.xlane.f32.xlu0 %v1194
      %v1364 = vpop.xlane.xlu0 %1363
      %1365 = vadd.xlane.f32.xlu0 %v1195
      %v1366 = vpop.xlane.xlu0 %1365
      %1367 = vadd.xlane.f32.xlu0 %v1196
      %v1368 = vpop.xlane.xlu0 %1367
      %1369 = vadd.xlane.f32.xlu0 %v1197
      %v1370 = vpop.xlane.xlu0 %1369
      %1371 = vadd.xlane.f32.xlu0 %v1198
      %v1372 = vpop.xlane.xlu0 %1371
      %1373 = vadd.xlane.f32.xlu0 %v1199
      %v1374 = vpop.xlane.xlu0 %1373
      %1375 = vadd.xlane.f32.xlu0 %v1200
      %v1376 = vpop.xlane.xlu0 %1375
      %1377 = vadd.xlane.f32.xlu0 %v1201
      %v1378 = vpop.xlane.xlu0 %1377
      %1379 = vadd.xlane.f32.xlu0 %v1202
      %v1380 = vpop.xlane.xlu0 %1379
      %1381 = vadd.xlane.f32.xlu0 %v1203
      %v1382 = vpop.xlane.xlu0 %1381
      %1383 = vadd.xlane.f32.xlu0 %v1204
      %v1384 = vpop.xlane.xlu0 %1383
      %1385 = vadd.xlane.f32.xlu0 %v1205
      %v1386 = vpop.xlane.xlu0 %1385
      %1387 = vadd.xlane.f32.xlu0 %v1206
      %v1388 = vpop.xlane.xlu0 %1387
      %1389 = vadd.xlane.f32.xlu0 %v1207
      %v1390 = vpop.xlane.xlu0 %1389
      %1391 = vadd.xlane.f32.xlu0 %v1208
      %v1392 = vpop.xlane.xlu0 %1391
      %1393 = vadd.xlane.f32.xlu0 %v1209
      %v1394 = vpop.xlane.xlu0 %1393
      %1395 = vadd.xlane.f32.xlu0 %v1210
      %v1396 = vpop.xlane.xlu0 %1395
      %1397 = vadd.xlane.f32.xlu0 %v1211
      %v1398 = vpop.xlane.xlu0 %1397
      %1399 = vadd.xlane.f32.xlu0 %v1212
      %v1400 = vpop.xlane.xlu0 %1399
      %1401 = vadd.xlane.f32.xlu0 %v1213
      %v1402 = vpop.xlane.xlu0 %1401
      %1403 = vadd.xlane.f32.xlu0 %v1214
      %v1404 = vpop.xlane.xlu0 %1403
      %1405 = vadd.xlane.f32.xlu0 %v1215
      %v1406 = vpop.xlane.xlu0 %1405
      %1407 = vadd.xlane.f32.xlu0 %v1216
      %v1408 = vpop.xlane.xlu0 %1407
      %1409 = vadd.xlane.f32.xlu0 %v1217
      %v1410 = vpop.xlane.xlu0 %1409
      %1411 = vadd.xlane.f32.xlu0 %v1218
      %v1412 = vpop.xlane.xlu0 %1411
      %1413 = vadd.xlane.f32.xlu0 %v1219
      %v1414 = vpop.xlane.xlu0 %1413
      %1415 = vadd.xlane.f32.xlu0 %v1220
      %v1416 = vpop.xlane.xlu0 %1415
      %1417 = vadd.xlane.f32.xlu0 %v1221
      %v1418 = vpop.xlane.xlu0 %1417
      %1419 = vadd.xlane.f32.xlu0 %v1222
      %v1420 = vpop.xlane.xlu0 %1419
      %1421 = vadd.xlane.f32.xlu0 %v1223
      %v1422 = vpop.xlane.xlu0 %1421
      %1423 = vadd.xlane.f32.xlu0 %v1224
      %v1424 = vpop.xlane.xlu0 %1423
      %1425 = vadd.xlane.f32.xlu0 %v1225
      %v1426 = vpop.xlane.xlu0 %1425
      %1427 = vadd.xlane.f32.xlu0 %v1226
      %v1428 = vpop.xlane.xlu0 %1427
      %1429 = vadd.xlane.f32.xlu0 %v1227
      %v1430 = vpop.xlane.xlu0 %1429
      %1431 = vadd.xlane.f32.xlu0 %v1228
      %v1432 = vpop.xlane.xlu0 %1431
      %1433 = vadd.xlane.f32.xlu0 %v1229
      %v1434 = vpop.xlane.xlu0 %1433
      %1435 = vadd.xlane.f32.xlu0 %v1230
      %v1436 = vpop.xlane.xlu0 %1435
      %1437 = vadd.xlane.f32.xlu0 %v1231
      %v1438 = vpop.xlane.xlu0 %1437
      %1439 = vadd.xlane.f32.xlu0 %v1232
      %v1440 = vpop.xlane.xlu0 %1439
      %1441 = vadd.xlane.f32.xlu0 %v1233
      %v1442 = vpop.xlane.xlu0 %1441
      %1443 = vadd.xlane.f32.xlu0 %v1234
      %v1444 = vpop.xlane.xlu0 %1443
      %1445 = vadd.xlane.f32.xlu0 %v1235
      %v1446 = vpop.xlane.xlu0 %1445
      %1447 = vadd.xlane.f32.xlu0 %v1236
      %v1448 = vpop.xlane.xlu0 %1447
      %1449 = vadd.xlane.f32.xlu0 %v1237
      %v1450 = vpop.xlane.xlu0 %1449
      %1451 = vadd.xlane.f32.xlu0 %v1238
      %v1452 = vpop.xlane.xlu0 %1451
      %1453 = vadd.xlane.f32.xlu0 %v1239
      %v1454 = vpop.xlane.xlu0 %1453
      %1455 = vadd.xlane.f32.xlu0 %v1240
      %v1456 = vpop.xlane.xlu0 %1455
      %1457 = vadd.xlane.f32.xlu0 %v1241
      %v1458 = vpop.xlane.xlu0 %1457
      %1459 = vadd.xlane.f32.xlu0 %v1242
      %v1460 = vpop.xlane.xlu0 %1459
      %1461 = vadd.xlane.f32.xlu0 %v1243
      %v1462 = vpop.xlane.xlu0 %1461
      %1463 = vadd.xlane.f32.xlu0 %v1244
      %v1464 = vpop.xlane.xlu0 %1463
      %1465 = vadd.xlane.f32.xlu0 %v1245
      %v1466 = vpop.xlane.xlu0 %1465
      %1467 = vadd.xlane.f32.xlu0 %v1246
      %v1468 = vpop.xlane.xlu0 %1467
      %1469 = vadd.xlane.f32.xlu0 %v1247
      %v1470 = vpop.xlane.xlu0 %1469
      %1471 = vadd.xlane.f32.xlu0 %v1248
      %v1472 = vpop.xlane.xlu0 %1471
      %1473 = vadd.xlane.f32.xlu0 %v1249
      %v1474 = vpop.xlane.xlu0 %1473
      %1475 = vadd.xlane.f32.xlu0 %v1250
      %v1476 = vpop.xlane.xlu0 %1475
      %1477 = vadd.xlane.f32.xlu0 %v1251
      %v1478 = vpop.xlane.xlu0 %1477
      %1479 = vadd.xlane.f32.xlu0 %v1252
      %v1480 = vpop.xlane.xlu0 %1479
      %1481 = vadd.xlane.f32.xlu0 %v1253
      %v1482 = vpop.xlane.xlu0 %1481
      %1483 = vadd.xlane.f32.xlu0 %v1254
      %v1484 = vpop.xlane.xlu0 %1483
      %1485 = vadd.xlane.f32.xlu0 %v1255
      %v1486 = vpop.xlane.xlu0 %1485
      %1487 = vadd.xlane.f32.xlu0 %v1256
      %v1488 = vpop.xlane.xlu0 %1487
      %1489 = vadd.xlane.f32.xlu0 %v1257
      %v1490 = vpop.xlane.xlu0 %1489
      %1491 = vadd.xlane.f32.xlu0 %v1258
      %v1492 = vpop.xlane.xlu0 %1491
      %1493 = vadd.xlane.f32.xlu0 %v1259
      %v1494 = vpop.xlane.xlu0 %1493
      %1495 = vadd.xlane.f32.xlu0 %v1260
      %v1496 = vpop.xlane.xlu0 %1495
      %1497 = vadd.xlane.f32.xlu0 %v1261
      %v1498 = vpop.xlane.xlu0 %1497
      %1499 = vadd.xlane.f32.xlu0 %v1262
      %v1500 = vpop.xlane.xlu0 %1499
      %1501 = vadd.xlane.f32.xlu0 %v1263
      %v1502 = vpop.xlane.xlu0 %1501
      %1503 = vadd.xlane.f32.xlu0 %v1264
      %v1504 = vpop.xlane.xlu0 %1503
      %1505 = vadd.xlane.f32.xlu0 %v1265
      %v1506 = vpop.xlane.xlu0 %1505
      %1507 = vadd.xlane.f32.xlu0 %v1266
      %v1508 = vpop.xlane.xlu0 %1507
      %1509 = vadd.xlane.f32.xlu0 %v1267
      %v1510 = vpop.xlane.xlu0 %1509
      %1511 = vadd.xlane.f32.xlu0 %v1268
      %v1512 = vpop.xlane.xlu0 %1511
      %1513 = vadd.xlane.f32.xlu0 %v1269
      %v1514 = vpop.xlane.xlu0 %1513
      %1515 = vadd.xlane.f32.xlu0 %v1270
      %v1516 = vpop.xlane.xlu0 %1515
      %1517 = vadd.xlane.f32.xlu0 %v1271
      %v1518 = vpop.xlane.xlu0 %1517
      %1519 = vadd.xlane.f32.xlu0 %v1272
      %v1520 = vpop.xlane.xlu0 %1519
      %1521 = vadd.xlane.f32.xlu0 %v1273
      %v1522 = vpop.xlane.xlu0 %1521
      %1523 = vadd.xlane.f32.xlu0 %v1274
      %v1524 = vpop.xlane.xlu0 %1523
      %1525 = vadd.xlane.f32.xlu0 %v1275
      %v1526 = vpop.xlane.xlu0 %1525
      %1527 = vadd.xlane.f32.xlu0 %v1276
      %v1528 = vpop.xlane.xlu0 %1527
      %1529 = vadd.xlane.f32.xlu0 %v1277
      %v1530 = vpop.xlane.xlu0 %1529
      %1531 = vadd.xlane.f32.xlu0 %v1278
      %v1532 = vpop.xlane.xlu0 %1531
      %1533 = vadd.xlane.f32.xlu0 %v1279
      %v1534 = vpop.xlane.xlu0 %1533
      %1535 = vadd.xlane.f32.xlu0 %v1280
      %v1536 = vpop.xlane.xlu0 %1535
      %v1538 = vlaneseq
      %v1539 = vshrl.u32 %v1538, 7
      %v1540 = vsub.s32 0, %v1539
      %v1541 = vrot.slane %v102, %v1540
      %1542 = vset.pattern.permute.xlu0 0
      %1543 = vperm.xlu0 %1542, %v1541
      %v1544 = vpop.permute.xlu0 %1543
      %v1546 = vadd.f32 %v1282, %v1544
      %v1547 = vadd.f32 %v1284, %v1544
      %v1548 = vadd.f32 %v1286, %v1544
      %v1549 = vadd.f32 %v1288, %v1544
      %v1550 = vadd.f32 %v1290, %v1544
      %v1551 = vadd.f32 %v1292, %v1544
      %v1552 = vadd.f32 %v1294, %v1544
      %v1553 = vadd.f32 %v1296, %v1544
      %v1554 = vadd.f32 %v1298, %v1544
      %v1555 = vadd.f32 %v1300, %v1544
      %v1556 = vadd.f32 %v1302, %v1544
      %v1557 = vadd.f32 %v1304, %v1544
      %v1558 = vadd.f32 %v1306, %v1544
      %v1559 = vadd.f32 %v1308, %v1544
      %v1560 = vadd.f32 %v1310, %v1544
      %v1561 = vadd.f32 %v1312, %v1544
      %v1562 = vadd.f32 %v1314, %v1544
      %v1563 = vadd.f32 %v1316, %v1544
      %v1564 = vadd.f32 %v1318, %v1544
      %v1565 = vadd.f32 %v1320, %v1544
      %v1566 = vadd.f32 %v1322, %v1544
      %v1567 = vadd.f32 %v1324, %v1544
      %v1568 = vadd.f32 %v1326, %v1544
      %v1569 = vadd.f32 %v1328, %v1544
      %v1570 = vadd.f32 %v1330, %v1544
      %v1571 = vadd.f32 %v1332, %v1544
      %v1572 = vadd.f32 %v1334, %v1544
      %v1573 = vadd.f32 %v1336, %v1544
      %v1574 = vadd.f32 %v1338, %v1544
      %v1575 = vadd.f32 %v1340, %v1544
      %v1576 = vadd.f32 %v1342, %v1544
      %v1577 = vadd.f32 %v1344, %v1544
      %v1578 = vadd.f32 %v1346, %v1544
      %v1579 = vadd.f32 %v1348, %v1544
      %v1580 = vadd.f32 %v1350, %v1544
      %v1581 = vadd.f32 %v1352, %v1544
      %v1582 = vadd.f32 %v1354, %v1544
      %v1583 = vadd.f32 %v1356, %v1544
      %v1584 = vadd.f32 %v1358, %v1544
      %v1585 = vadd.f32 %v1360, %v1544
      %v1586 = vadd.f32 %v1362, %v1544
      %v1587 = vadd.f32 %v1364, %v1544
      %v1588 = vadd.f32 %v1366, %v1544
      %v1589 = vadd.f32 %v1368, %v1544
      %v1590 = vadd.f32 %v1370, %v1544
      %v1591 = vadd.f32 %v1372, %v1544
      %v1592 = vadd.f32 %v1374, %v1544
      %v1593 = vadd.f32 %v1376, %v1544
      %v1594 = vadd.f32 %v1378, %v1544
      %v1595 = vadd.f32 %v1380, %v1544
      %v1596 = vadd.f32 %v1382, %v1544
      %v1597 = vadd.f32 %v1384, %v1544
      %v1598 = vadd.f32 %v1386, %v1544
      %v1599 = vadd.f32 %v1388, %v1544
      %v1600 = vadd.f32 %v1390, %v1544
      %v1601 = vadd.f32 %v1392, %v1544
      %v1602 = vadd.f32 %v1394, %v1544
      %v1603 = vadd.f32 %v1396, %v1544
      %v1604 = vadd.f32 %v1398, %v1544
      %v1605 = vadd.f32 %v1400, %v1544
      %v1606 = vadd.f32 %v1402, %v1544
      %v1607 = vadd.f32 %v1404, %v1544
      %v1608 = vadd.f32 %v1406, %v1544
      %v1609 = vadd.f32 %v1408, %v1544
      %v1610 = vadd.f32 %v1410, %v1544
      %v1611 = vadd.f32 %v1412, %v1544
      %v1612 = vadd.f32 %v1414, %v1544
      %v1613 = vadd.f32 %v1416, %v1544
      %v1614 = vadd.f32 %v1418, %v1544
      %v1615 = vadd.f32 %v1420, %v1544
      %v1616 = vadd.f32 %v1422, %v1544
      %v1617 = vadd.f32 %v1424, %v1544
      %v1618 = vadd.f32 %v1426, %v1544
      %v1619 = vadd.f32 %v1428, %v1544
      %v1620 = vadd.f32 %v1430, %v1544
      %v1621 = vadd.f32 %v1432, %v1544
      %v1622 = vadd.f32 %v1434, %v1544
      %v1623 = vadd.f32 %v1436, %v1544
      %v1624 = vadd.f32 %v1438, %v1544
      %v1625 = vadd.f32 %v1440, %v1544
      %v1626 = vadd.f32 %v1442, %v1544
      %v1627 = vadd.f32 %v1444, %v1544
      %v1628 = vadd.f32 %v1446, %v1544
      %v1629 = vadd.f32 %v1448, %v1544
      %v1630 = vadd.f32 %v1450, %v1544
      %v1631 = vadd.f32 %v1452, %v1544
      %v1632 = vadd.f32 %v1454, %v1544
      %v1633 = vadd.f32 %v1456, %v1544
      %v1634 = vadd.f32 %v1458, %v1544
      %v1635 = vadd.f32 %v1460, %v1544
      %v1636 = vadd.f32 %v1462, %v1544
      %v1637 = vadd.f32 %v1464, %v1544
      %v1638 = vadd.f32 %v1466, %v1544
      %v1639 = vadd.f32 %v1468, %v1544
      %v1640 = vadd.f32 %v1470, %v1544
      %v1641 = vadd.f32 %v1472, %v1544
      %v1642 = vadd.f32 %v1474, %v1544
      %v1643 = vadd.f32 %v1476, %v1544
      %v1644 = vadd.f32 %v1478, %v1544
      %v1645 = vadd.f32 %v1480, %v1544
      %v1646 = vadd.f32 %v1482, %v1544
      %v1647 = vadd.f32 %v1484, %v1544
      %v1648 = vadd.f32 %v1486, %v1544
      %v1649 = vadd.f32 %v1488, %v1544
      %v1650 = vadd.f32 %v1490, %v1544
      %v1651 = vadd.f32 %v1492, %v1544
      %v1652 = vadd.f32 %v1494, %v1544
      %v1653 = vadd.f32 %v1496, %v1544
      %v1654 = vadd.f32 %v1498, %v1544
      %v1655 = vadd.f32 %v1500, %v1544
      %v1656 = vadd.f32 %v1502, %v1544
      %v1657 = vadd.f32 %v1504, %v1544
      %v1658 = vadd.f32 %v1506, %v1544
      %v1659 = vadd.f32 %v1508, %v1544
      %v1660 = vadd.f32 %v1510, %v1544
      %v1661 = vadd.f32 %v1512, %v1544
      %v1662 = vadd.f32 %v1514, %v1544
      %v1663 = vadd.f32 %v1516, %v1544
      %v1664 = vadd.f32 %v1518, %v1544
      %v1665 = vadd.f32 %v1520, %v1544
      %v1666 = vadd.f32 %v1522, %v1544
      %v1667 = vadd.f32 %v1524, %v1544
      %v1668 = vadd.f32 %v1526, %v1544
      %v1669 = vadd.f32 %v1528, %v1544
      %v1670 = vadd.f32 %v1530, %v1544
      %v1671 = vadd.f32 %v1532, %v1544
      %v1672 = vadd.f32 %v1534, %v1544
      %v1673 = vadd.f32 %v1536, %v1544
      %v1802 = vlaneseq
      %v1803 = vand.u32 %v1802, 127
      %v1804 = vlaneseq
      %v1805 = vshrl.u32 %v1804, 7
      %v1806 = vsub.s32 %v1803, %v1805
      %v1807 = vrot.slane %v1546, %v1806
      %v1808 = vadd.s32 %v1803, 4294967288
      %v1809 = vlaneseq
      %v1810 = vshrl.u32 %v1809, 7
      %v1811 = vsub.s32 %v1808, %v1810
      %v1812 = vrot.slane %v1547, %v1811
      %vm1813 = vcmask 130112
      %v1814 = vsel %vm1813, %v1812, %v1807
      %v1815 = vadd.s32 %v1803, 4294967280
      %v1816 = vlaneseq
      %v1817 = vshrl.u32 %v1816, 7
      %v1818 = vsub.s32 %v1815, %v1817
      %v1819 = vrot.slane %v1548, %v1818
      %vm1820 = vcmask 195712
      %v1821 = vsel %vm1820, %v1819, %v1814
      %v1822 = vadd.s32 %v1803, 4294967272
      %v1823 = vlaneseq
      %v1824 = vshrl.u32 %v1823, 7
      %v1825 = vsub.s32 %v1822, %v1824
      %v1826 = vrot.slane %v1549, %v1825
      %vm1827 = vcmask 261312
      %v1828 = vsel %vm1827, %v1826, %v1821
      %v1829 = vadd.s32 %v1803, 4294967264
      %v1830 = vlaneseq
      %v1831 = vshrl.u32 %v1830, 7
      %v1832 = vsub.s32 %v1829, %v1831
      %v1833 = vrot.slane %v1550, %v1832
      %vm1834 = vcmask 326912
      %v1835 = vsel %vm1834, %v1833, %v1828
      %v1836 = vadd.s32 %v1803, 4294967256
      %v1837 = vlaneseq
      %v1838 = vshrl.u32 %v1837, 7
      %v1839 = vsub.s32 %v1836, %v1838
      %v1840 = vrot.slane %v1551, %v1839
      %vm1841 = vcmask 392512
      %v1842 = vsel %vm1841, %v1840, %v1835
      %v1843 = vadd.s32 %v1803, 4294967248
      %v1844 = vlaneseq
      %v1845 = vshrl.u32 %v1844, 7
      %v1846 = vsub.s32 %v1843, %v1845
      %v1847 = vrot.slane %v1552, %v1846
      %vm1848 = vcmask 458112
      %v1849 = vsel %vm1848, %v1847, %v1842
      %v1850 = vadd.s32 %v1803, 4294967240
      %v1851 = vlaneseq
      %v1852 = vshrl.u32 %v1851, 7
      %v1853 = vsub.s32 %v1850, %v1852
      %v1854 = vrot.slane %v1553, %v1853
      %vm1855 = vcmask 523712
      %v1856 = vsel %vm1855, %v1854, %v1849
      %v1857 = vadd.s32 %v1803, 4294967232
      %v1858 = vlaneseq
      %v1859 = vshrl.u32 %v1858, 7
      %v1860 = vsub.s32 %v1857, %v1859
      %v1861 = vrot.slane %v1554, %v1860
      %vm1862 = vcmask 589312
      %v1863 = vsel %vm1862, %v1861, %v1856
      %v1864 = vadd.s32 %v1803, 4294967224
      %v1865 = vlaneseq
      %v1866 = vshrl.u32 %v1865, 7
      %v1867 = vsub.s32 %v1864, %v1866
      %v1868 = vrot.slane %v1555, %v1867
      %vm1869 = vcmask 654912
      %v1870 = vsel %vm1869, %v1868, %v1863
      %v1871 = vadd.s32 %v1803, 4294967216
      %v1872 = vlaneseq
      %v1873 = vshrl.u32 %v1872, 7
      %v1874 = vsub.s32 %v1871, %v1873
      %v1875 = vrot.slane %v1556, %v1874
      %vm1876 = vcmask 720512
      %v1877 = vsel %vm1876, %v1875, %v1870
      %v1878 = vadd.s32 %v1803, 4294967208
      %v1879 = vlaneseq
      %v1880 = vshrl.u32 %v1879, 7
      %v1881 = vsub.s32 %v1878, %v1880
      %v1882 = vrot.slane %v1557, %v1881
      %vm1883 = vcmask 786112
      %v1884 = vsel %vm1883, %v1882, %v1877
      %v1885 = vadd.s32 %v1803, 4294967200
      %v1886 = vlaneseq
      %v1887 = vshrl.u32 %v1886, 7
      %v1888 = vsub.s32 %v1885, %v1887
      %v1889 = vrot.slane %v1558, %v1888
      %vm1890 = vcmask 851712
      %v1891 = vsel %vm1890, %v1889, %v1884
      %v1892 = vadd.s32 %v1803, 4294967192
      %v1893 = vlaneseq
      %v1894 = vshrl.u32 %v1893, 7
      %v1895 = vsub.s32 %v1892, %v1894
      %v1896 = vrot.slane %v1559, %v1895
      %vm1897 = vcmask 917312
      %v1898 = vsel %vm1897, %v1896, %v1891
      %v1899 = vadd.s32 %v1803, 4294967184
      %v1900 = vlaneseq
      %v1901 = vshrl.u32 %v1900, 7
      %v1902 = vsub.s32 %v1899, %v1901
      %v1903 = vrot.slane %v1560, %v1902
      %vm1904 = vcmask 982912
      %v1905 = vsel %vm1904, %v1903, %v1898
      %v1906 = vadd.s32 %v1803, 4294967176
      %v1907 = vlaneseq
      %v1908 = vshrl.u32 %v1907, 7
      %v1909 = vsub.s32 %v1906, %v1908
      %v1910 = vrot.slane %v1561, %v1909
      %vm1911 = vcmask 1048512
      %v1912 = vsel %vm1911, %v1910, %v1905
      %v1913 = vlaneseq
      %v1914 = vshrl.u32 %v1913, 7
      %v1915 = vsub.s32 %v1803, %v1914
      %v1916 = vrot.slane %v1562, %v1915
      %v1917 = vlaneseq
      %v1918 = vshrl.u32 %v1917, 7
      %v1919 = vsub.s32 %v1808, %v1918
      %v1920 = vrot.slane %v1563, %v1919
      %v1921 = vsel %vm1813, %v1920, %v1916
      %v1922 = vlaneseq
      %v1923 = vshrl.u32 %v1922, 7
      %v1924 = vsub.s32 %v1815, %v1923
      %v1925 = vrot.slane %v1564, %v1924
      %v1926 = vsel %vm1820, %v1925, %v1921
      %v1927 = vlaneseq
      %v1928 = vshrl.u32 %v1927, 7
      %v1929 = vsub.s32 %v1822, %v1928
      %v1930 = vrot.slane %v1565, %v1929
      %v1931 = vsel %vm1827, %v1930, %v1926
      %v1932 = vlaneseq
      %v1933 = vshrl.u32 %v1932, 7
      %v1934 = vsub.s32 %v1829, %v1933
      %v1935 = vrot.slane %v1566, %v1934
      %v1936 = vsel %vm1834, %v1935, %v1931
      %v1937 = vlaneseq
      %v1938 = vshrl.u32 %v1937, 7
      %v1939 = vsub.s32 %v1836, %v1938
      %v1940 = vrot.slane %v1567, %v1939
      %v1941 = vsel %vm1841, %v1940, %v1936
      %v1942 = vlaneseq
      %v1943 = vshrl.u32 %v1942, 7
      %v1944 = vsub.s32 %v1843, %v1943
      %v1945 = vrot.slane %v1568, %v1944
      %v1946 = vsel %vm1848, %v1945, %v1941
      %v1947 = vlaneseq
      %v1948 = vshrl.u32 %v1947, 7
      %v1949 = vsub.s32 %v1850, %v1948
      %v1950 = vrot.slane %v1569, %v1949
      %v1951 = vsel %vm1855, %v1950, %v1946
      %v1952 = vlaneseq
      %v1953 = vshrl.u32 %v1952, 7
      %v1954 = vsub.s32 %v1857, %v1953
      %v1955 = vrot.slane %v1570, %v1954
      %v1956 = vsel %vm1862, %v1955, %v1951
      %v1957 = vlaneseq
      %v1958 = vshrl.u32 %v1957, 7
      %v1959 = vsub.s32 %v1864, %v1958
      %v1960 = vrot.slane %v1571, %v1959
      %v1961 = vsel %vm1869, %v1960, %v1956
      %v1962 = vlaneseq
      %v1963 = vshrl.u32 %v1962, 7
      %v1964 = vsub.s32 %v1871, %v1963
      %v1965 = vrot.slane %v1572, %v1964
      %v1966 = vsel %vm1876, %v1965, %v1961
      %v1967 = vlaneseq
      %v1968 = vshrl.u32 %v1967, 7
      %v1969 = vsub.s32 %v1878, %v1968
      %v1970 = vrot.slane %v1573, %v1969
      %v1971 = vsel %vm1883, %v1970, %v1966
      %v1972 = vlaneseq
      %v1973 = vshrl.u32 %v1972, 7
      %v1974 = vsub.s32 %v1885, %v1973
      %v1975 = vrot.slane %v1574, %v1974
      %v1976 = vsel %vm1890, %v1975, %v1971
      %v1977 = vlaneseq
      %v1978 = vshrl.u32 %v1977, 7
      %v1979 = vsub.s32 %v1892, %v1978
      %v1980 = vrot.slane %v1575, %v1979
      %v1981 = vsel %vm1897, %v1980, %v1976
      %v1982 = vlaneseq
      %v1983 = vshrl.u32 %v1982, 7
      %v1984 = vsub.s32 %v1899, %v1983
      %v1985 = vrot.slane %v1576, %v1984
      %v1986 = vsel %vm1904, %v1985, %v1981
      %v1987 = vlaneseq
      %v1988 = vshrl.u32 %v1987, 7
      %v1989 = vsub.s32 %v1906, %v1988
      %v1990 = vrot.slane %v1577, %v1989
      %v1991 = vsel %vm1911, %v1990, %v1986
      %v1992 = vlaneseq
      %v1993 = vshrl.u32 %v1992, 7
      %v1994 = vsub.s32 %v1803, %v1993
      %v1995 = vrot.slane %v1578, %v1994
      %v1996 = vlaneseq
      %v1997 = vshrl.u32 %v1996, 7
      %v1998 = vsub.s32 %v1808, %v1997
      %v1999 = vrot.slane %v1579, %v1998
      %v2000 = vsel %vm1813, %v1999, %v1995
      %v2001 = vlaneseq
      %v2002 = vshrl.u32 %v2001, 7
      %v2003 = vsub.s32 %v1815, %v2002
      %v2004 = vrot.slane %v1580, %v2003
      %v2005 = vsel %vm1820, %v2004, %v2000
      %v2006 = vlaneseq
      %v2007 = vshrl.u32 %v2006, 7
      %v2008 = vsub.s32 %v1822, %v2007
      %v2009 = vrot.slane %v1581, %v2008
      %v2010 = vsel %vm1827, %v2009, %v2005
      %v2011 = vlaneseq
      %v2012 = vshrl.u32 %v2011, 7
      %v2013 = vsub.s32 %v1829, %v2012
      %v2014 = vrot.slane %v1582, %v2013
      %v2015 = vsel %vm1834, %v2014, %v2010
      %v2016 = vlaneseq
      %v2017 = vshrl.u32 %v2016, 7
      %v2018 = vsub.s32 %v1836, %v2017
      %v2019 = vrot.slane %v1583, %v2018
      %v2020 = vsel %vm1841, %v2019, %v2015
      %v2021 = vlaneseq
      %v2022 = vshrl.u32 %v2021, 7
      %v2023 = vsub.s32 %v1843, %v2022
      %v2024 = vrot.slane %v1584, %v2023
      %v2025 = vsel %vm1848, %v2024, %v2020
      %v2026 = vlaneseq
      %v2027 = vshrl.u32 %v2026, 7
      %v2028 = vsub.s32 %v1850, %v2027
      %v2029 = vrot.slane %v1585, %v2028
      %v2030 = vsel %vm1855, %v2029, %v2025
      %v2031 = vlaneseq
      %v2032 = vshrl.u32 %v2031, 7
      %v2033 = vsub.s32 %v1857, %v2032
      %v2034 = vrot.slane %v1586, %v2033
      %v2035 = vsel %vm1862, %v2034, %v2030
      %v2036 = vlaneseq
      %v2037 = vshrl.u32 %v2036, 7
      %v2038 = vsub.s32 %v1864, %v2037
      %v2039 = vrot.slane %v1587, %v2038
      %v2040 = vsel %vm1869, %v2039, %v2035
      %v2041 = vlaneseq
      %v2042 = vshrl.u32 %v2041, 7
      %v2043 = vsub.s32 %v1871, %v2042
      %v2044 = vrot.slane %v1588, %v2043
      %v2045 = vsel %vm1876, %v2044, %v2040
      %v2046 = vlaneseq
      %v2047 = vshrl.u32 %v2046, 7
      %v2048 = vsub.s32 %v1878, %v2047
      %v2049 = vrot.slane %v1589, %v2048
      %v2050 = vsel %vm1883, %v2049, %v2045
      %v2051 = vlaneseq
      %v2052 = vshrl.u32 %v2051, 7
      %v2053 = vsub.s32 %v1885, %v2052
      %v2054 = vrot.slane %v1590, %v2053
      %v2055 = vsel %vm1890, %v2054, %v2050
      %v2056 = vlaneseq
      %v2057 = vshrl.u32 %v2056, 7
      %v2058 = vsub.s32 %v1892, %v2057
      %v2059 = vrot.slane %v1591, %v2058
      %v2060 = vsel %vm1897, %v2059, %v2055
      %v2061 = vlaneseq
      %v2062 = vshrl.u32 %v2061, 7
      %v2063 = vsub.s32 %v1899, %v2062
      %v2064 = vrot.slane %v1592, %v2063
      %v2065 = vsel %vm1904, %v2064, %v2060
      %v2066 = vlaneseq
      %v2067 = vshrl.u32 %v2066, 7
      %v2068 = vsub.s32 %v1906, %v2067
      %v2069 = vrot.slane %v1593, %v2068
      %v2070 = vsel %vm1911, %v2069, %v2065
      %v2071 = vlaneseq
      %v2072 = vshrl.u32 %v2071, 7
      %v2073 = vsub.s32 %v1803, %v2072
      %v2074 = vrot.slane %v1594, %v2073
      %v2075 = vlaneseq
      %v2076 = vshrl.u32 %v2075, 7
      %v2077 = vsub.s32 %v1808, %v2076
      %v2078 = vrot.slane %v1595, %v2077
      %v2079 = vsel %vm1813, %v2078, %v2074
      %v2080 = vlaneseq
      %v2081 = vshrl.u32 %v2080, 7
      %v2082 = vsub.s32 %v1815, %v2081
      %v2083 = vrot.slane %v1596, %v2082
      %v2084 = vsel %vm1820, %v2083, %v2079
      %v2085 = vlaneseq
      %v2086 = vshrl.u32 %v2085, 7
      %v2087 = vsub.s32 %v1822, %v2086
      %v2088 = vrot.slane %v1597, %v2087
      %v2089 = vsel %vm1827, %v2088, %v2084
      %v2090 = vlaneseq
      %v2091 = vshrl.u32 %v2090, 7
      %v2092 = vsub.s32 %v1829, %v2091
      %v2093 = vrot.slane %v1598, %v2092
      %v2094 = vsel %vm1834, %v2093, %v2089
      %v2095 = vlaneseq
      %v2096 = vshrl.u32 %v2095, 7
      %v2097 = vsub.s32 %v1836, %v2096
      %v2098 = vrot.slane %v1599, %v2097
      %v2099 = vsel %vm1841, %v2098, %v2094
      %v2100 = vlaneseq
      %v2101 = vshrl.u32 %v2100, 7
      %v2102 = vsub.s32 %v1843, %v2101
      %v2103 = vrot.slane %v1600, %v2102
      %v2104 = vsel %vm1848, %v2103, %v2099
      %v2105 = vlaneseq
      %v2106 = vshrl.u32 %v2105, 7
      %v2107 = vsub.s32 %v1850, %v2106
      %v2108 = vrot.slane %v1601, %v2107
      %v2109 = vsel %vm1855, %v2108, %v2104
      %v2110 = vlaneseq
      %v2111 = vshrl.u32 %v2110, 7
      %v2112 = vsub.s32 %v1857, %v2111
      %v2113 = vrot.slane %v1602, %v2112
      %v2114 = vsel %vm1862, %v2113, %v2109
      %v2115 = vlaneseq
      %v2116 = vshrl.u32 %v2115, 7
      %v2117 = vsub.s32 %v1864, %v2116
      %v2118 = vrot.slane %v1603, %v2117
      %v2119 = vsel %vm1869, %v2118, %v2114
      %v2120 = vlaneseq
      %v2121 = vshrl.u32 %v2120, 7
      %v2122 = vsub.s32 %v1871, %v2121
      %v2123 = vrot.slane %v1604, %v2122
      %v2124 = vsel %vm1876, %v2123, %v2119
      %v2125 = vlaneseq
      %v2126 = vshrl.u32 %v2125, 7
      %v2127 = vsub.s32 %v1878, %v2126
      %v2128 = vrot.slane %v1605, %v2127
      %v2129 = vsel %vm1883, %v2128, %v2124
      %v2130 = vlaneseq
      %v2131 = vshrl.u32 %v2130, 7
      %v2132 = vsub.s32 %v1885, %v2131
      %v2133 = vrot.slane %v1606, %v2132
      %v2134 = vsel %vm1890, %v2133, %v2129
      %v2135 = vlaneseq
      %v2136 = vshrl.u32 %v2135, 7
      %v2137 = vsub.s32 %v1892, %v2136
      %v2138 = vrot.slane %v1607, %v2137
      %v2139 = vsel %vm1897, %v2138, %v2134
      %v2140 = vlaneseq
      %v2141 = vshrl.u32 %v2140, 7
      %v2142 = vsub.s32 %v1899, %v2141
      %v2143 = vrot.slane %v1608, %v2142
      %v2144 = vsel %vm1904, %v2143, %v2139
      %v2145 = vlaneseq
      %v2146 = vshrl.u32 %v2145, 7
      %v2147 = vsub.s32 %v1906, %v2146
      %v2148 = vrot.slane %v1609, %v2147
      %v2149 = vsel %vm1911, %v2148, %v2144
      %v2150 = vlaneseq
      %v2151 = vshrl.u32 %v2150, 7
      %v2152 = vsub.s32 %v1803, %v2151
      %v2153 = vrot.slane %v1610, %v2152
      %v2154 = vlaneseq
      %v2155 = vshrl.u32 %v2154, 7
      %v2156 = vsub.s32 %v1808, %v2155
      %v2157 = vrot.slane %v1611, %v2156
      %v2158 = vsel %vm1813, %v2157, %v2153
      %v2159 = vlaneseq
      %v2160 = vshrl.u32 %v2159, 7
      %v2161 = vsub.s32 %v1815, %v2160
      %v2162 = vrot.slane %v1612, %v2161
      %v2163 = vsel %vm1820, %v2162, %v2158
      %v2164 = vlaneseq
      %v2165 = vshrl.u32 %v2164, 7
      %v2166 = vsub.s32 %v1822, %v2165
      %v2167 = vrot.slane %v1613, %v2166
      %v2168 = vsel %vm1827, %v2167, %v2163
      %v2169 = vlaneseq
      %v2170 = vshrl.u32 %v2169, 7
      %v2171 = vsub.s32 %v1829, %v2170
      %v2172 = vrot.slane %v1614, %v2171
      %v2173 = vsel %vm1834, %v2172, %v2168
      %v2174 = vlaneseq
      %v2175 = vshrl.u32 %v2174, 7
      %v2176 = vsub.s32 %v1836, %v2175
      %v2177 = vrot.slane %v1615, %v2176
      %v2178 = vsel %vm1841, %v2177, %v2173
      %v2179 = vlaneseq
      %v2180 = vshrl.u32 %v2179, 7
      %v2181 = vsub.s32 %v1843, %v2180
      %v2182 = vrot.slane %v1616, %v2181
      %v2183 = vsel %vm1848, %v2182, %v2178
      %v2184 = vlaneseq
      %v2185 = vshrl.u32 %v2184, 7
      %v2186 = vsub.s32 %v1850, %v2185
      %v2187 = vrot.slane %v1617, %v2186
      %v2188 = vsel %vm1855, %v2187, %v2183
      %v2189 = vlaneseq
      %v2190 = vshrl.u32 %v2189, 7
      %v2191 = vsub.s32 %v1857, %v2190
      %v2192 = vrot.slane %v1618, %v2191
      %v2193 = vsel %vm1862, %v2192, %v2188
      %v2194 = vlaneseq
      %v2195 = vshrl.u32 %v2194, 7
      %v2196 = vsub.s32 %v1864, %v2195
      %v2197 = vrot.slane %v1619, %v2196
      %v2198 = vsel %vm1869, %v2197, %v2193
      %v2199 = vlaneseq
      %v2200 = vshrl.u32 %v2199, 7
      %v2201 = vsub.s32 %v1871, %v2200
      %v2202 = vrot.slane %v1620, %v2201
      %v2203 = vsel %vm1876, %v2202, %v2198
      %v2204 = vlaneseq
      %v2205 = vshrl.u32 %v2204, 7
      %v2206 = vsub.s32 %v1878, %v2205
      %v2207 = vrot.slane %v1621, %v2206
      %v2208 = vsel %vm1883, %v2207, %v2203
      %v2209 = vlaneseq
      %v2210 = vshrl.u32 %v2209, 7
      %v2211 = vsub.s32 %v1885, %v2210
      %v2212 = vrot.slane %v1622, %v2211
      %v2213 = vsel %vm1890, %v2212, %v2208
      %v2214 = vlaneseq
      %v2215 = vshrl.u32 %v2214, 7
      %v2216 = vsub.s32 %v1892, %v2215
      %v2217 = vrot.slane %v1623, %v2216
      %v2218 = vsel %vm1897, %v2217, %v2213
      %v2219 = vlaneseq
      %v2220 = vshrl.u32 %v2219, 7
      %v2221 = vsub.s32 %v1899, %v2220
      %v2222 = vrot.slane %v1624, %v2221
      %v2223 = vsel %vm1904, %v2222, %v2218
      %v2224 = vlaneseq
      %v2225 = vshrl.u32 %v2224, 7
      %v2226 = vsub.s32 %v1906, %v2225
      %v2227 = vrot.slane %v1625, %v2226
      %v2228 = vsel %vm1911, %v2227, %v2223
      %v2229 = vlaneseq
      %v2230 = vshrl.u32 %v2229, 7
      %v2231 = vsub.s32 %v1803, %v2230
      %v2232 = vrot.slane %v1626, %v2231
      %v2233 = vlaneseq
      %v2234 = vshrl.u32 %v2233, 7
      %v2235 = vsub.s32 %v1808, %v2234
      %v2236 = vrot.slane %v1627, %v2235
      %v2237 = vsel %vm1813, %v2236, %v2232
      %v2238 = vlaneseq
      %v2239 = vshrl.u32 %v2238, 7
      %v2240 = vsub.s32 %v1815, %v2239
      %v2241 = vrot.slane %v1628, %v2240
      %v2242 = vsel %vm1820, %v2241, %v2237
      %v2243 = vlaneseq
      %v2244 = vshrl.u32 %v2243, 7
      %v2245 = vsub.s32 %v1822, %v2244
      %v2246 = vrot.slane %v1629, %v2245
      %v2247 = vsel %vm1827, %v2246, %v2242
      %v2248 = vlaneseq
      %v2249 = vshrl.u32 %v2248, 7
      %v2250 = vsub.s32 %v1829, %v2249
      %v2251 = vrot.slane %v1630, %v2250
      %v2252 = vsel %vm1834, %v2251, %v2247
      %v2253 = vlaneseq
      %v2254 = vshrl.u32 %v2253, 7
      %v2255 = vsub.s32 %v1836, %v2254
      %v2256 = vrot.slane %v1631, %v2255
      %v2257 = vsel %vm1841, %v2256, %v2252
      %v2258 = vlaneseq
      %v2259 = vshrl.u32 %v2258, 7
      %v2260 = vsub.s32 %v1843, %v2259
      %v2261 = vrot.slane %v1632, %v2260
      %v2262 = vsel %vm1848, %v2261, %v2257
      %v2263 = vlaneseq
      %v2264 = vshrl.u32 %v2263, 7
      %v2265 = vsub.s32 %v1850, %v2264
      %v2266 = vrot.slane %v1633, %v2265
      %v2267 = vsel %vm1855, %v2266, %v2262
      %v2268 = vlaneseq
      %v2269 = vshrl.u32 %v2268, 7
      %v2270 = vsub.s32 %v1857, %v2269
      %v2271 = vrot.slane %v1634, %v2270
      %v2272 = vsel %vm1862, %v2271, %v2267
      %v2273 = vlaneseq
      %v2274 = vshrl.u32 %v2273, 7
      %v2275 = vsub.s32 %v1864, %v2274
      %v2276 = vrot.slane %v1635, %v2275
      %v2277 = vsel %vm1869, %v2276, %v2272
      %v2278 = vlaneseq
      %v2279 = vshrl.u32 %v2278, 7
      %v2280 = vsub.s32 %v1871, %v2279
      %v2281 = vrot.slane %v1636, %v2280
      %v2282 = vsel %vm1876, %v2281, %v2277
      %v2283 = vlaneseq
      %v2284 = vshrl.u32 %v2283, 7
      %v2285 = vsub.s32 %v1878, %v2284
      %v2286 = vrot.slane %v1637, %v2285
      %v2287 = vsel %vm1883, %v2286, %v2282
      %v2288 = vlaneseq
      %v2289 = vshrl.u32 %v2288, 7
      %v2290 = vsub.s32 %v1885, %v2289
      %v2291 = vrot.slane %v1638, %v2290
      %v2292 = vsel %vm1890, %v2291, %v2287
      %v2293 = vlaneseq
      %v2294 = vshrl.u32 %v2293, 7
      %v2295 = vsub.s32 %v1892, %v2294
      %v2296 = vrot.slane %v1639, %v2295
      %v2297 = vsel %vm1897, %v2296, %v2292
      %v2298 = vlaneseq
      %v2299 = vshrl.u32 %v2298, 7
      %v2300 = vsub.s32 %v1899, %v2299
      %v2301 = vrot.slane %v1640, %v2300
      %v2302 = vsel %vm1904, %v2301, %v2297
      %v2303 = vlaneseq
      %v2304 = vshrl.u32 %v2303, 7
      %v2305 = vsub.s32 %v1906, %v2304
      %v2306 = vrot.slane %v1641, %v2305
      %v2307 = vsel %vm1911, %v2306, %v2302
      %v2308 = vlaneseq
      %v2309 = vshrl.u32 %v2308, 7
      %v2310 = vsub.s32 %v1803, %v2309
      %v2311 = vrot.slane %v1642, %v2310
      %v2312 = vlaneseq
      %v2313 = vshrl.u32 %v2312, 7
      %v2314 = vsub.s32 %v1808, %v2313
      %v2315 = vrot.slane %v1643, %v2314
      %v2316 = vsel %vm1813, %v2315, %v2311
      %v2317 = vlaneseq
      %v2318 = vshrl.u32 %v2317, 7
      %v2319 = vsub.s32 %v1815, %v2318
      %v2320 = vrot.slane %v1644, %v2319
      %v2321 = vsel %vm1820, %v2320, %v2316
      %v2322 = vlaneseq
      %v2323 = vshrl.u32 %v2322, 7
      %v2324 = vsub.s32 %v1822, %v2323
      %v2325 = vrot.slane %v1645, %v2324
      %v2326 = vsel %vm1827, %v2325, %v2321
      %v2327 = vlaneseq
      %v2328 = vshrl.u32 %v2327, 7
      %v2329 = vsub.s32 %v1829, %v2328
      %v2330 = vrot.slane %v1646, %v2329
      %v2331 = vsel %vm1834, %v2330, %v2326
      %v2332 = vlaneseq
      %v2333 = vshrl.u32 %v2332, 7
      %v2334 = vsub.s32 %v1836, %v2333
      %v2335 = vrot.slane %v1647, %v2334
      %v2336 = vsel %vm1841, %v2335, %v2331
      %v2337 = vlaneseq
      %v2338 = vshrl.u32 %v2337, 7
      %v2339 = vsub.s32 %v1843, %v2338
      %v2340 = vrot.slane %v1648, %v2339
      %v2341 = vsel %vm1848, %v2340, %v2336
      %v2342 = vlaneseq
      %v2343 = vshrl.u32 %v2342, 7
      %v2344 = vsub.s32 %v1850, %v2343
      %v2345 = vrot.slane %v1649, %v2344
      %v2346 = vsel %vm1855, %v2345, %v2341
      %v2347 = vlaneseq
      %v2348 = vshrl.u32 %v2347, 7
      %v2349 = vsub.s32 %v1857, %v2348
      %v2350 = vrot.slane %v1650, %v2349
      %v2351 = vsel %vm1862, %v2350, %v2346
      %v2352 = vlaneseq
      %v2353 = vshrl.u32 %v2352, 7
      %v2354 = vsub.s32 %v1864, %v2353
      %v2355 = vrot.slane %v1651, %v2354
      %v2356 = vsel %vm1869, %v2355, %v2351
      %v2357 = vlaneseq
      %v2358 = vshrl.u32 %v2357, 7
      %v2359 = vsub.s32 %v1871, %v2358
      %v2360 = vrot.slane %v1652, %v2359
      %v2361 = vsel %vm1876, %v2360, %v2356
      %v2362 = vlaneseq
      %v2363 = vshrl.u32 %v2362, 7
      %v2364 = vsub.s32 %v1878, %v2363
      %v2365 = vrot.slane %v1653, %v2364
      %v2366 = vsel %vm1883, %v2365, %v2361
      %v2367 = vlaneseq
      %v2368 = vshrl.u32 %v2367, 7
      %v2369 = vsub.s32 %v1885, %v2368
      %v2370 = vrot.slane %v1654, %v2369
      %v2371 = vsel %vm1890, %v2370, %v2366
      %v2372 = vlaneseq
      %v2373 = vshrl.u32 %v2372, 7
      %v2374 = vsub.s32 %v1892, %v2373
      %v2375 = vrot.slane %v1655, %v2374
      %v2376 = vsel %vm1897, %v2375, %v2371
      %v2377 = vlaneseq
      %v2378 = vshrl.u32 %v2377, 7
      %v2379 = vsub.s32 %v1899, %v2378
      %v2380 = vrot.slane %v1656, %v2379
      %v2381 = vsel %vm1904, %v2380, %v2376
      %v2382 = vlaneseq
      %v2383 = vshrl.u32 %v2382, 7
      %v2384 = vsub.s32 %v1906, %v2383
      %v2385 = vrot.slane %v1657, %v2384
      %v2386 = vsel %vm1911, %v2385, %v2381
      %v2387 = vlaneseq
      %v2388 = vshrl.u32 %v2387, 7
      %v2389 = vsub.s32 %v1803, %v2388
      %v2390 = vrot.slane %v1658, %v2389
      %v2391 = vlaneseq
      %v2392 = vshrl.u32 %v2391, 7
      %v2393 = vsub.s32 %v1808, %v2392
      %v2394 = vrot.slane %v1659, %v2393
      %v2395 = vsel %vm1813, %v2394, %v2390
      %v2396 = vlaneseq
      %v2397 = vshrl.u32 %v2396, 7
      %v2398 = vsub.s32 %v1815, %v2397
      %v2399 = vrot.slane %v1660, %v2398
      %v2400 = vsel %vm1820, %v2399, %v2395
      %v2401 = vlaneseq
      %v2402 = vshrl.u32 %v2401, 7
      %v2403 = vsub.s32 %v1822, %v2402
      %v2404 = vrot.slane %v1661, %v2403
      %v2405 = vsel %vm1827, %v2404, %v2400
      %v2406 = vlaneseq
      %v2407 = vshrl.u32 %v2406, 7
      %v2408 = vsub.s32 %v1829, %v2407
      %v2409 = vrot.slane %v1662, %v2408
      %v2410 = vsel %vm1834, %v2409, %v2405
      %v2411 = vlaneseq
      %v2412 = vshrl.u32 %v2411, 7
      %v2413 = vsub.s32 %v1836, %v2412
      %v2414 = vrot.slane %v1663, %v2413
      %v2415 = vsel %vm1841, %v2414, %v2410
      %v2416 = vlaneseq
      %v2417 = vshrl.u32 %v2416, 7
      %v2418 = vsub.s32 %v1843, %v2417
      %v2419 = vrot.slane %v1664, %v2418
      %v2420 = vsel %vm1848, %v2419, %v2415
      %v2421 = vlaneseq
      %v2422 = vshrl.u32 %v2421, 7
      %v2423 = vsub.s32 %v1850, %v2422
      %v2424 = vrot.slane %v1665, %v2423
      %v2425 = vsel %vm1855, %v2424, %v2420
      %v2426 = vlaneseq
      %v2427 = vshrl.u32 %v2426, 7
      %v2428 = vsub.s32 %v1857, %v2427
      %v2429 = vrot.slane %v1666, %v2428
      %v2430 = vsel %vm1862, %v2429, %v2425
      %v2431 = vlaneseq
      %v2432 = vshrl.u32 %v2431, 7
      %v2433 = vsub.s32 %v1864, %v2432
      %v2434 = vrot.slane %v1667, %v2433
      %v2435 = vsel %vm1869, %v2434, %v2430
      %v2436 = vlaneseq
      %v2437 = vshrl.u32 %v2436, 7
      %v2438 = vsub.s32 %v1871, %v2437
      %v2439 = vrot.slane %v1668, %v2438
      %v2440 = vsel %vm1876, %v2439, %v2435
      %v2441 = vlaneseq
      %v2442 = vshrl.u32 %v2441, 7
      %v2443 = vsub.s32 %v1878, %v2442
      %v2444 = vrot.slane %v1669, %v2443
      %v2445 = vsel %vm1883, %v2444, %v2440
      %v2446 = vlaneseq
      %v2447 = vshrl.u32 %v2446, 7
      %v2448 = vsub.s32 %v1885, %v2447
      %v2449 = vrot.slane %v1670, %v2448
      %v2450 = vsel %vm1890, %v2449, %v2445
      %v2451 = vlaneseq
      %v2452 = vshrl.u32 %v2451, 7
      %v2453 = vsub.s32 %v1892, %v2452
      %v2454 = vrot.slane %v1671, %v2453
      %v2455 = vsel %vm1897, %v2454, %v2450
      %v2456 = vlaneseq
      %v2457 = vshrl.u32 %v2456, 7
      %v2458 = vsub.s32 %v1899, %v2457
      %v2459 = vrot.slane %v1672, %v2458
      %v2460 = vsel %vm1904, %v2459, %v2455
      %v2461 = vlaneseq
      %v2462 = vshrl.u32 %v2461, 7
      %v2463 = vsub.s32 %v1906, %v2462
      %v2464 = vrot.slane %v1673, %v2463
      %v2465 = vsel %vm1911, %v2464, %v2460
      %vm2466 = vcmask 1041409
      %v2467 = vsel %vm2466, %v1991, %v1912
      %vm2468 = vcmask 1042434
      %v2469 = vsel %vm2468, %v2070, %v2467
      %vm2470 = vcmask 1043459
      %v2471 = vsel %vm2470, %v2149, %v2469
      %vm2472 = vcmask 1044484
      %v2473 = vsel %vm2472, %v2228, %v2471
      %vm2474 = vcmask 1045509
      %v2475 = vsel %vm2474, %v2307, %v2473
      %vm2476 = vcmask 1046534
      %v2477 = vsel %vm2476, %v2386, %v2475
      %vm2478 = vcmask 1047559
      %v2479 = vsel %vm2478, %v2465, %v2477
      %s2481 = scalar_lea.vmem [#allocation9], %s109
      %2482 = vst [vmem:[%s2481] sm:$0xff] %v2479
    $region42: #{tpu_custom_call.1} parent=1 // loop_footer
      %s108 = sadd.s32 1, %s104
    $region43: #{tpu_custom_call.1} parent=1 // loop_footer_branch
      %103 = sbr.rel target = $region39
    $region44: #{tpu_custom_call.1} parent=1 // loop_exit
      _
    // Predicated region
    $region45: #{tpu_custom_call.1} parent=1 // pred_check
      _
    $region46: #{tpu_custom_call.1} parent=1 // pred_check_branch
      %2484 = sbr.rel (0) target = $region48
    $region47: #{tpu_custom_call.1} parent=1 // pred_region
      %s2486 = ssub.s32 256, 256
      %2487 = vsyncadd [#allocation5], %s2486
      %s2488 = sshll.u32 [#allocation9], 4
      %s2489 = int_to_ptr.vmem [resolvable:$true] %s2488
      %2494 = dma.vmem_to_hbm [thread:$0]  %s2489, 256, %s6, [#allocation5], 128, 128, 8
    $region48: #{tpu_custom_call.1} parent=1 // pred_fallthru
      _
    // Predicated region
    $region49: #{tpu_custom_call.1} parent=1 // pred_check
      _
    $region50: #{tpu_custom_call.1} parent=1 // pred_check_branch
      %2496 = sbr.rel (0) target = $region52
    $region51: #{tpu_custom_call.1} parent=1 // pred_region
      %2497 = dma.done [#allocation5], 256
    $region52: #{tpu_custom_call.1} parent=1 // pred_fallthru
      _
    %2498 = vsyncpa [#allocation4], 1
    %2499 = vsyncpa [#allocation7], 1
    %2500 = vsyncpa [#allocation5], 1

</llo_original>
